<compile_context>
chip_gen: v6e
topology: v6e:2x2x1
jax: 0.10.0
libtpu: 0.0.40
codegen_flags: <defaults>
</compile_context>

<pallas_src>
import functools

import jax
import jax.numpy as jnp
from jax.experimental import pallas as pl
from jax.experimental.pallas import tpu as pltpu

LOG_SIG_MAX = 2.0
LOG_SIG_MIN = -20.0

IN_DIM = 3
HIDDEN = 512
OUT_DIM = 4  # fused head: cols 0:2 = a_mean, cols 2:4 = a_logstd


def _round_up(x, m):
    return ((x + m - 1) // m) * m


def policy_net_kernel(x_ref, w1_ref, w23_ref, b123_ref, wh_ref, bh_ref, out_ref):
    # fc1 + relu (K=3 matmul is negligible; MXU pads it)
    x = x_ref[...].astype(jnp.bfloat16)
    h = jnp.dot(x, w1_ref[...], preferred_element_type=jnp.float32)
    h = jnp.maximum(h + b123_ref[0:1, :], 0.0)

    # fc2 + relu  (bf16 weights, f32 accumulation)
    h = jnp.dot(h.astype(jnp.bfloat16), w23_ref[0],
                preferred_element_type=jnp.float32)
    h = jnp.maximum(h + b123_ref[1:2, :], 0.0)

    # fc3 + relu
    h = jnp.dot(h.astype(jnp.bfloat16), w23_ref[1],
                preferred_element_type=jnp.float32)
    h = jnp.maximum(h + b123_ref[2:3, :], 0.0)

    # fused heads: single (512, 4) matmul, clamp only the logstd columns.
    out = jnp.dot(h.astype(jnp.bfloat16), wh_ref[...],
                  preferred_element_type=jnp.float32) + bh_ref[...]
    col = jax.lax.broadcasted_iota(jnp.int32, out.shape, 1)
    out = jnp.where(col >= 2,
                    jnp.clip(out, LOG_SIG_MIN, LOG_SIG_MAX),
                    out)
    out_ref[...] = out.astype(out_ref.dtype)


@functools.partial(jax.jit, static_argnames=("block_b",))
def policy_net_forward(x, params, block_b=256):
    """x: (B, 3) float32 -> (a_mean (B, 2), a_logstd (B, 2))."""
    B = x.shape[0]
    tb = min(block_b, _round_up(B, 8))     # batch tile (multiple of 8)
    b_pad = _round_up(B, tb)
    if b_pad != B:
        x = jnp.pad(x, ((0, b_pad - B), (0, 0)))

    out = pl.pallas_call(
        policy_net_kernel,
        out_shape=jax.ShapeDtypeStruct((b_pad, OUT_DIM), jnp.float32),
        grid_spec=pltpu.PrefetchScalarGridSpec(
            num_scalar_prefetch=0,
            grid=(b_pad // tb,),
            in_specs=[
                pl.BlockSpec((tb, IN_DIM), lambda i: (i, 0)),           # x tile
                pl.BlockSpec((IN_DIM, HIDDEN), lambda i: (0, 0)),       # w1 (bf16)
                pl.BlockSpec((2, HIDDEN, HIDDEN), lambda i: (0, 0, 0)),  # w2|w3 (bf16)
                pl.BlockSpec((3, HIDDEN), lambda i: (0, 0)),            # b1|b2|b3 (f32)
                pl.BlockSpec((HIDDEN, OUT_DIM), lambda i: (0, 0)),      # wm|wl (bf16)
                pl.BlockSpec((1, OUT_DIM), lambda i: (0, 0)),           # bm|bl (f32)
            ],
            out_specs=pl.BlockSpec((tb, OUT_DIM), lambda i: (i, 0)),
        ),
        compiler_params=pltpu.CompilerParams(
            dimension_semantics=("parallel",)),
    )(x,
      params["w1"], params["w23"], params["b123"],
      params["wh"], params["bh"])

    a_mean = out[:B, 0:2]
    a_logstd = out[:B, 2:4]
    return a_mean, a_logstd


def init_params(key):
    """Deterministic init mimicking PyTorch nn.Linear defaults
    (uniform(-1/sqrt(fan_in), +1/sqrt(fan_in))), packed/cast for the kernel."""
    def linear(k, fan_in, fan_out):
        kw, kb = jax.random.split(k)
        bound = 1.0 / float(jnp.sqrt(jnp.float32(fan_in)))
        w = jax.random.uniform(kw, (fan_in, fan_out), jnp.float32, -bound, bound)
        b = jax.random.uniform(kb, (fan_out,), jnp.float32, -bound, bound)
        return w, b

    k1, k2, k3, k4, k5 = jax.random.split(key, 5)
    w1, b1 = linear(k1, IN_DIM, HIDDEN)
    w2, b2 = linear(k2, HIDDEN, HIDDEN)
    w3, b3 = linear(k3, HIDDEN, HIDDEN)
    wm, bm = linear(k4, HIDDEN, 2)
    wl, bl = linear(k5, HIDDEN, 2)

    return dict(
        w1=w1.astype(jnp.bfloat16),                                  # (3, 512)
        w23=jnp.stack([w2, w3], axis=0).astype(jnp.bfloat16),        # (2, 512, 512)
        b123=jnp.stack([b1, b2, b3], axis=0),                        # (3, 512) f32
        wh=jnp.concatenate([wm, wl], axis=1).astype(jnp.bfloat16),   # (512, 4)
        bh=jnp.concatenate([bm, bl], axis=0)[None, :],               # (1, 4) f32
    )


def reference_forward(x, p):
    """Pure-JAX reference using the same bf16 weights / f32 accumulation."""
    def mm(a, w):
        return jnp.dot(a.astype(jnp.bfloat16), w,
                       preferred_element_type=jnp.float32)
    h = jnp.maximum(mm(x, p["w1"]) + p["b123"][0], 0.0)
    h = jnp.maximum(mm(h, p["w23"][0]) + p["b123"][1], 0.0)
    h = jnp.maximum(mm(h, p["w23"][1]) + p["b123"][2], 0.0)
    out = mm(h, p["wh"]) + p["bh"]
    a_mean = out[:, 0:2]
    a_logstd = jnp.clip(out[:, 2:4], LOG_SIG_MIN, LOG_SIG_MAX)
    return a_mean, a_logstd


if __name__ == "__main__":
    key = jax.random.PRNGKey(0)
    pkey, xkey = jax.random.split(key)
    params = init_params(pkey)

    batch = 8
    x = jax.random.normal(xkey, (batch, IN_DIM), jnp.float32)

    a_mean, a_logstd = jax.block_until_ready(policy_net_forward(x, params))

    # sanity check vs pure-JAX reference (same bf16 weight math)
    r_mean, r_logstd = reference_forward(x, params)
    assert a_mean.shape == (batch, 2) and a_logstd.shape == (batch, 2)
    assert jnp.allclose(a_mean, r_mean, atol=1e-2, rtol=1e-2)
    assert jnp.allclose(a_logstd, r_logstd, atol=1e-2, rtol=1e-2)

    # TODO(synk): the `sample` method (rsample / tanh-squashed log_prob) is a
    # separate stochastic path and is not part of forward(); not implemented.
    print("KERNEL_OK")
</pallas_src>

<mosaic_0001>
module attributes {stable_mosaic.version = 11 : i64} {
  func.func @policy_net_kernel(%arg0: i32, %arg1: memref<8x3xf32, #tpu.memory_space<vmem>>, %arg2: memref<3x512xbf16, #tpu.memory_space<vmem>>, %arg3: memref<2x512x512xbf16, #tpu.memory_space<vmem>>, %arg4: memref<3x512xf32, #tpu.memory_space<vmem>>, %arg5: memref<512x4xbf16, #tpu.memory_space<vmem>>, %arg6: memref<1x4xf32, #tpu.memory_space<vmem>>, %arg7: memref<8x4xf32, #tpu.memory_space<vmem>>) attributes {dimension_semantics = [#tpu.dimension_semantics<parallel>], iteration_bounds = array<i64: 1>, scalar_prefetch = 0 : i64, scratch_operands = 0 : i64, tpu.core_type = #tpu.core_type<tc>, window_params = [{transform_indices = @transform_0, window_bounds = array<i64: 8, 3>}, {pipeline_mode = #tpu.pipeline_mode<synchronous>, transform_indices = @transform_1, window_bounds = array<i64: 3, 512>}, {pipeline_mode = #tpu.pipeline_mode<synchronous>, transform_indices = @transform_2, window_bounds = array<i64: 2, 512, 512>}, {pipeline_mode = #tpu.pipeline_mode<synchronous>, transform_indices = @transform_3, window_bounds = array<i64: 3, 512>}, {pipeline_mode = #tpu.pipeline_mode<synchronous>, transform_indices = @transform_4, window_bounds = array<i64: 512, 4>}, {pipeline_mode = #tpu.pipeline_mode<synchronous>, transform_indices = @transform_5, window_bounds = array<i64: 1, 4>}, {transform_indices = @transform_6, window_bounds = array<i64: 8, 4>}]} {
    %c0 = arith.constant 0 : index
    %c0_0 = arith.constant 0 : index
    %0 = vector.load %arg1[%c0, %c0_0] : memref<8x3xf32, #tpu.memory_space<vmem>>, vector<8x3xf32>
    %1 = arith.truncf %0 : vector<8x3xf32> to vector<8x3xbf16>
    %c0_1 = arith.constant 0 : index
    %c0_2 = arith.constant 0 : index
    %2 = vector.load %arg2[%c0_1, %c0_2] : memref<3x512xbf16, #tpu.memory_space<vmem>>, vector<3x512xbf16>
    %cst = arith.constant dense<0.000000e+00> : vector<8x512xf32>
    %3 = tpu.matmul %1, %2, %cst {dimension_numbers = #tpu.dot_dimension_numbers<[1], [0], [0], [1], [0, 0, 1, 1], [], []>} : vector<8x3xbf16>, vector<3x512xbf16>, vector<8x512xf32> -> vector<8x512xf32>
    %c0_3 = arith.constant 0 : index
    %c0_4 = arith.constant 0 : index
    %4 = vector.load %arg4[%c0_3, %c0_4] : memref<3x512xf32, #tpu.memory_space<vmem>>, vector<1x512xf32>
    %5 = vector.broadcast %4 : vector<1x512xf32> to vector<8x512xf32>
    %6 = arith.addf %3, %5 : vector<8x512xf32>
    %cst_5 = arith.constant 0.000000e+00 : f32
    %7 = vector.broadcast %cst_5 : f32 to vector<8x512xf32>
    %8 = arith.maximumf %6, %7 : vector<8x512xf32>
    %9 = arith.truncf %8 : vector<8x512xf32> to vector<8x512xbf16>
    %c0_6 = arith.constant 0 : index
    %c0_7 = arith.constant 0 : index
    %c0_8 = arith.constant 0 : index
    %10 = vector.load %arg3[%c0_6, %c0_7, %c0_8] : memref<2x512x512xbf16, #tpu.memory_space<vmem>>, vector<1x512x512xbf16>
    %11 = vector.shape_cast %10 : vector<1x512x512xbf16> to vector<512x512xbf16>
    %cst_9 = arith.constant dense<0.000000e+00> : vector<8x512xf32>
    %12 = tpu.matmul %9, %11, %cst_9 {dimension_numbers = #tpu.dot_dimension_numbers<[1], [0], [0], [1], [0, 0, 1, 1], [], []>} : vector<8x512xbf16>, vector<512x512xbf16>, vector<8x512xf32> -> vector<8x512xf32>
    %c1 = arith.constant 1 : index
    %c0_10 = arith.constant 0 : index
    %13 = vector.load %arg4[%c1, %c0_10] : memref<3x512xf32, #tpu.memory_space<vmem>>, vector<1x512xf32>
    %14 = vector.broadcast %13 : vector<1x512xf32> to vector<8x512xf32>
    %15 = arith.addf %12, %14 : vector<8x512xf32>
    %cst_11 = arith.constant 0.000000e+00 : f32
    %16 = vector.broadcast %cst_11 : f32 to vector<8x512xf32>
    %17 = arith.maximumf %15, %16 : vector<8x512xf32>
    %18 = arith.truncf %17 : vector<8x512xf32> to vector<8x512xbf16>
    %c1_12 = arith.constant 1 : index
    %c0_13 = arith.constant 0 : index
    %c0_14 = arith.constant 0 : index
    %19 = vector.load %arg3[%c1_12, %c0_13, %c0_14] : memref<2x512x512xbf16, #tpu.memory_space<vmem>>, vector<1x512x512xbf16>
    %20 = vector.shape_cast %19 : vector<1x512x512xbf16> to vector<512x512xbf16>
    %cst_15 = arith.constant dense<0.000000e+00> : vector<8x512xf32>
    %21 = tpu.matmul %18, %20, %cst_15 {dimension_numbers = #tpu.dot_dimension_numbers<[1], [0], [0], [1], [0, 0, 1, 1], [], []>} : vector<8x512xbf16>, vector<512x512xbf16>, vector<8x512xf32> -> vector<8x512xf32>
    %c2 = arith.constant 2 : index
    %c0_16 = arith.constant 0 : index
    %22 = vector.load %arg4[%c2, %c0_16] : memref<3x512xf32, #tpu.memory_space<vmem>>, vector<1x512xf32>
    %23 = vector.broadcast %22 : vector<1x512xf32> to vector<8x512xf32>
    %24 = arith.addf %21, %23 : vector<8x512xf32>
    %cst_17 = arith.constant 0.000000e+00 : f32
    %25 = vector.broadcast %cst_17 : f32 to vector<8x512xf32>
    %26 = arith.maximumf %24, %25 : vector<8x512xf32>
    %27 = arith.truncf %26 : vector<8x512xf32> to vector<8x512xbf16>
    %c0_18 = arith.constant 0 : index
    %c0_19 = arith.constant 0 : index
    %28 = vector.load %arg5[%c0_18, %c0_19] : memref<512x4xbf16, #tpu.memory_space<vmem>>, vector<512x4xbf16>
    %cst_20 = arith.constant dense<0.000000e+00> : vector<8x4xf32>
    %29 = tpu.matmul %27, %28, %cst_20 {dimension_numbers = #tpu.dot_dimension_numbers<[1], [0], [0], [1], [0, 0, 1, 1], [], []>} : vector<8x512xbf16>, vector<512x4xbf16>, vector<8x4xf32> -> vector<8x4xf32>
    %c0_21 = arith.constant 0 : index
    %c0_22 = arith.constant 0 : index
    %30 = vector.load %arg6[%c0_21, %c0_22] : memref<1x4xf32, #tpu.memory_space<vmem>>, vector<1x4xf32>
    %31 = vector.broadcast %30 : vector<1x4xf32> to vector<8x4xf32>
    %32 = arith.addf %29, %31 : vector<8x4xf32>
    %33 = tpu.iota {dimensions = array<i32: 1>} : vector<8x4xi32>
    %c2_i32 = arith.constant 2 : i32
    %34 = vector.broadcast %c2_i32 : i32 to vector<8x4xi32>
    %35 = arith.cmpi sge, %33, %34 : vector<8x4xi32>
    %cst_23 = arith.constant -2.000000e+01 : f32
    %cst_24 = arith.constant 2.000000e+00 : f32
    %36 = vector.broadcast %cst_23 : f32 to vector<8x4xf32>
    %37 = arith.maximumf %36, %32 : vector<8x4xf32>
    %38 = vector.broadcast %cst_24 : f32 to vector<8x4xf32>
    %39 = arith.minimumf %38, %37 : vector<8x4xf32>
    %40 = arith.select %35, %39, %32 : vector<8x4xi1>, vector<8x4xf32>
    %c0_25 = arith.constant 0 : index
    %c0_26 = arith.constant 0 : index
    %41 = vector.load %arg7[%c0_25, %c0_26] : memref<8x4xf32, #tpu.memory_space<vmem>>, vector<8x4xf32>
    tpu.vector_store %arg7[%c0_25, %c0_26], %40 {strides = array<i32>} : memref<8x4xf32, #tpu.memory_space<vmem>>, vector<8x4xf32>,
    return
  }
  func.func @transform_0(%arg0: i32) -> (i32, i32) {
    %c0_i32 = arith.constant 0 : i32
    %c0_i32_0 = arith.constant 0 : i32
    return %arg0, %c0_i32 : i32, i32
  }
  func.func @transform_1(%arg0: i32) -> (i32, i32) {
    %c0_i32 = arith.constant 0 : i32
    %c0_i32_0 = arith.constant 0 : i32
    %c0_i32_1 = arith.constant 0 : i32
    return %c0_i32, %c0_i32_0 : i32, i32
  }
  func.func @transform_2(%arg0: i32) -> (i32, i32, i32) {
    %c0_i32 = arith.constant 0 : i32
    %c0_i32_0 = arith.constant 0 : i32
    %c0_i32_1 = arith.constant 0 : i32
    %c0_i32_2 = arith.constant 0 : i32
    return %c0_i32, %c0_i32_0, %c0_i32_1 : i32, i32, i32
  }
  func.func @transform_3(%arg0: i32) -> (i32, i32) {
    %c0_i32 = arith.constant 0 : i32
    %c0_i32_0 = arith.constant 0 : i32
    %c0_i32_1 = arith.constant 0 : i32
    return %c0_i32, %c0_i32_0 : i32, i32
  }
  func.func @transform_4(%arg0: i32) -> (i32, i32) {
    %c0_i32 = arith.constant 0 : i32
    %c0_i32_0 = arith.constant 0 : i32
    %c0_i32_1 = arith.constant 0 : i32
    return %c0_i32, %c0_i32_0 : i32, i32
  }
  func.func @transform_5(%arg0: i32) -> (i32, i32) {
    %c0_i32 = arith.constant 0 : i32
    %c0_i32_0 = arith.constant 0 : i32
    %c0_i32_1 = arith.constant 0 : i32
    return %c0_i32, %c0_i32_0 : i32, i32
  }
  func.func @transform_6(%arg0: i32) -> (i32, i32) {
    %c0_i32 = arith.constant 0 : i32
    %c0_i32_0 = arith.constant 0 : i32
    return %arg0, %c0_i32 : i32, i32
  }
}

</mosaic_0001>

<llo_original>
// kernel: policy_net_forward.1
$region0: #{policy_net_forward.1}
  #allocation0 [shape = 'u32[]', space=smem, size = 0x4, offset = 0x4, fixed_abs, tag = 'smem constant byte address 0x4 - core index']
  #allocation1 [shape = 'u32[144,128]{1,0:T(1,128)}', space=vmem, size = 0x12000, scoped, tag = 'internal scratch']
  %s0 = inlined_call_operand.vmem [shape: f32[8,3], index: 0, kind: input, shape index: {}]
  %s1 = inlined_call_operand.vmem [shape: bf16[3,512], index: 1, kind: input, shape index: {}]
  %s2 = inlined_call_operand.hbm [shape: bf16[2,512,512], index: 2, kind: input, shape index: {}]
  %s3 = inlined_call_operand.vmem [shape: f32[3,512], index: 3, kind: input, shape index: {}]
  %s4 = inlined_call_operand.vmem [shape: bf16[512,4], index: 4, kind: input, shape index: {}]
  %s5 = inlined_call_operand.vmem [shape: f32[1,4], index: 5, kind: input, shape index: {}]
  %s6 = inlined_call_operand.vmem [shape: f32[8,4], index: 6, kind: output, shape index: {}]
  %s7 = sld [smem:[#allocation0]]
  $region38: #{policy_net_forward.1} parent=0
    _
  %s9 = ssub.s32 1, %s7
  %s10 = scalar_select 0, %s9, %s7
  $region1: #{policy_net_forward.1} parent=0
    #allocation2 [shape = 'u8[1048576]{0}', space=vmem, size = 0x100000, scoped, tag = 'input window, operand 2, single buffered']
    #allocation3 [shape = 's32[1]{0}', space=sflag, size = 0x4, scoped, tag = 'scoped memory for policy_net_forward.1']
    %11 = vsyncpa [#allocation3], 0
    // Predicated region
    $region2: #{policy_net_forward.1} parent=1 // pred_check
      _
    $region3: #{policy_net_forward.1} parent=1 // pred_check_branch
      %13 = sbr.rel (0) target = $region5
    $region4: #{policy_net_forward.1} parent=1 // pred_region
      _
    $region5: #{policy_net_forward.1} parent=1 // pred_fallthru
      _
    // Predicated region
    $region6: #{policy_net_forward.1} parent=1 // pred_check
      _
    $region7: #{policy_net_forward.1} parent=1 // pred_check_branch
      %15 = sbr.rel (0) target = $region9
    $region8: #{policy_net_forward.1} parent=1 // pred_region
      _
    $region9: #{policy_net_forward.1} parent=1 // pred_fallthru
      _
    // Predicated region
    $region10: #{policy_net_forward.1} parent=1 // pred_check
      _
    $region11: #{policy_net_forward.1} parent=1 // pred_check_branch
      %17 = sbr.rel (0) target = $region13
    $region12: #{policy_net_forward.1} parent=1 // pred_region
      %s19 = ssub.s32 32768, 32768
      %20 = vsyncadd [#allocation3], %s19
      %s21 = sshll.u32 [#allocation2], 4
      %s22 = int_to_ptr.vmem [resolvable:$true] %s21
      %27 = dma.hbm_to_vmem [thread:$0]  %s2, 32768, %s22, [#allocation3], 256, 256, 16
    $region13: #{policy_net_forward.1} parent=1 // pred_fallthru
      _
    // Predicated region
    $region14: #{policy_net_forward.1} parent=1 // pred_check
      _
    $region15: #{policy_net_forward.1} parent=1 // pred_check_branch
      %29 = sbr.rel (0) target = $region17
    $region16: #{policy_net_forward.1} parent=1 // pred_region
      _
    $region17: #{policy_net_forward.1} parent=1 // pred_fallthru
      _
    // Predicated region
    $region18: #{policy_net_forward.1} parent=1 // pred_check
      _
    $region19: #{policy_net_forward.1} parent=1 // pred_check_branch
      %31 = sbr.rel (0) target = $region21
    $region20: #{policy_net_forward.1} parent=1 // pred_region
      _
    $region21: #{policy_net_forward.1} parent=1 // pred_fallthru
      _
    // Predicated region
    $region22: #{policy_net_forward.1} parent=1 // pred_check
      _
    $region23: #{policy_net_forward.1} parent=1 // pred_check_branch
      %33 = sbr.rel (0) target = $region25
    $region24: #{policy_net_forward.1} parent=1 // pred_region
      _
    $region25: #{policy_net_forward.1} parent=1 // pred_fallthru
      _
    // Predicated region
    $region26: #{policy_net_forward.1} parent=1 // pred_check
      _
    $region27: #{policy_net_forward.1} parent=1 // pred_check_branch
      %35 = sbr.rel (0) target = $region29
    $region28: #{policy_net_forward.1} parent=1 // pred_region
      %36 = dma.done [#allocation3], 32768
    $region29: #{policy_net_forward.1} parent=1 // pred_fallthru
      _
    %v38 = vld [vmem:[%s0] sm:$0xff]
    %v39 = vpack.c.bf16 %v38, %v38
    %v40 = vld [vmem:[%s1] sm:$0xff]
    %v41 = vld [vmem:[%s3] ss:$4 sm:$0xf]
    %v43 = vlaneseq
    %v44 = vshrl.u32 %v43, 7
    %v45 = vsub.s32 0, %v44
    %v46 = vrot.slane %v41, %v45
    %v47 = vlaneseq
    %v48 = vshrl.u32 %v47, 7
    %v49 = vsub.s32 1, %v48
    %v50 = vrot.slane %v41, %v49
    %v51 = vlaneseq
    %v52 = vshrl.u32 %v51, 7
    %v53 = vsub.s32 2, %v52
    %v54 = vrot.slane %v41, %v53
    %v55 = vlaneseq
    %v56 = vshrl.u32 %v55, 7
    %v57 = vsub.s32 3, %v56
    %v58 = vrot.slane %v41, %v57
    %v64 = vcombine.high %v40, %v40
    %v66 = vunpack.c.l.s4 1983009808
    %v67 = vunpack.c.0.s8 %v66
    %v68 = vlaneseq
    %v69 = vshrl.u32 %v68, 7
    %v70 = vsub.s32 %v67, %v69
    %v71 = vrot.slane %v40, %v70
    %v73 = vunpack.c.l.s4 1983009808
    %v74 = vunpack.c.0.s8 %v73
    %v75 = vlaneseq
    %v76 = vshrl.u32 %v75, 7
    %v77 = vsub.s32 %v74, %v76
    %v78 = vrot.slane %v64, %v77
    %v79 = vcombine.high %v71, %v71
    %v80 = vcombine.high %v78, %v78
    %vm81 = vcmask 23552
    %v83 = vsel %vm81, %v39, 0
    %vm85 = vcmask 1040384
    %vm86 = vcmask 1041408
    %v87 = vsel %vm85, 4294967295, 65535
    %v88 = vsel %vm86, %v87, 0
    %v90 = vand.u32 %v71, %v88
    %v93 = vand.u32 %v79, %v88
    %v96 = vand.u32 %v78, %v88
    %v99 = vand.u32 %v80, %v88
    %101 = vmatprep.subr.bf16.mxu0 0
    %102 = vmatpush1.bf16.msra.mxu0 0
    %103 = vmatprep.subr.bf16.mxu0 0
    %104 = vmatpush1.bf16.msra.mxu0 0
    %105 = vmatprep.subr.bf16.mxu0 0
    %106 = vmatpush1.bf16.msra.mxu0 0
    %107 = vmatprep.subr.bf16.mxu0 0
    %108 = vmatpush1.bf16.msra.mxu0 0
    %109 = vmatprep.subr.bf16.mxu0 0
    %110 = vmatpush1.bf16.msra.mxu0 0
    %111 = vmatprep.subr.bf16.mxu0 0
    %112 = vmatpush1.bf16.msra.mxu0 0
    %113 = vmatprep.subr.bf16.mxu0 0
    %114 = vmatpush1.bf16.msra.mxu0 0
    %115 = vmatprep.subr.bf16.mxu0 %v93
    %116 = vmatpush1.bf16.msra.mxu0 %v90
    %117 = vmatprep.subr.bf16.mxu0 0
    %118 = vmatpush2.bf16.msra.mxu0 0
    %119 = vmatprep.subr.bf16.mxu0 0
    %120 = vmatpush2.bf16.msra.mxu0 0
    %121 = vmatprep.subr.bf16.mxu0 0
    %122 = vmatpush2.bf16.msra.mxu0 0
    %123 = vmatprep.subr.bf16.mxu0 0
    %124 = vmatpush2.bf16.msra.mxu0 0
    %125 = vmatprep.subr.bf16.mxu0 0
    %126 = vmatpush2.bf16.msra.mxu0 0
    %127 = vmatprep.subr.bf16.mxu0 0
    %128 = vmatpush2.bf16.msra.mxu0 0
    %129 = vmatprep.subr.bf16.mxu0 0
    %130 = vmatpush2.bf16.msra.mxu0 0
    %131 = vmatprep.subr.bf16.mxu0 0
    %132 = vmatpush2.bf16.msra.mxu0 0
    %133 = vmatprep.mubr.bf16.mxu0 0
    %134 = vmatmul.mubr.bf16.gmra.mxu0 %v83
    %v135 = vpop.f32.mrf.mxu0
    %v136 = vadd.f32 %v46, %v135
    %v137 = vpop.f32.mrf.mxu0
    %v138 = vadd.f32 %v50, %v137
    %v139 = vpop.f32.mrf.mxu0
    %v140 = vpop.f32.mrf.mxu0
    %141 = vdwg.mxu0
    %142 = vmatprep.subr.bf16.mxu0 0
    %143 = vmatpush1.bf16.msra.mxu0 0
    %144 = vmatprep.subr.bf16.mxu0 0
    %145 = vmatpush1.bf16.msra.mxu0 0
    %146 = vmatprep.subr.bf16.mxu0 0
    %147 = vmatpush1.bf16.msra.mxu0 0
    %148 = vmatprep.subr.bf16.mxu0 0
    %149 = vmatpush1.bf16.msra.mxu0 0
    %150 = vmatprep.subr.bf16.mxu0 0
    %151 = vmatpush1.bf16.msra.mxu0 0
    %152 = vmatprep.subr.bf16.mxu0 0
    %153 = vmatpush1.bf16.msra.mxu0 0
    %154 = vmatprep.subr.bf16.mxu0 0
    %155 = vmatpush1.bf16.msra.mxu0 0
    %156 = vmatprep.subr.bf16.mxu0 %v99
    %157 = vmatpush1.bf16.msra.mxu0 %v96
    %158 = vmatprep.subr.bf16.mxu0 0
    %159 = vmatpush2.bf16.msra.mxu0 0
    %160 = vmatprep.subr.bf16.mxu0 0
    %161 = vmatpush2.bf16.msra.mxu0 0
    %162 = vmatprep.subr.bf16.mxu0 0
    %163 = vmatpush2.bf16.msra.mxu0 0
    %164 = vmatprep.subr.bf16.mxu0 0
    %165 = vmatpush2.bf16.msra.mxu0 0
    %166 = vmatprep.subr.bf16.mxu0 0
    %167 = vmatpush2.bf16.msra.mxu0 0
    %168 = vmatprep.subr.bf16.mxu0 0
    %169 = vmatpush2.bf16.msra.mxu0 0
    %170 = vmatprep.subr.bf16.mxu0 0
    %171 = vmatpush2.bf16.msra.mxu0 0
    %172 = vmatprep.subr.bf16.mxu0 0
    %173 = vmatpush2.bf16.msra.mxu0 0
    %174 = vmatprep.mubr.bf16.mxu0 0
    %175 = vmatmul.mubr.bf16.gmra.mxu0 %v83
    %v176 = vpop.f32.mrf.mxu0
    %v177 = vadd.f32 %v54, %v176
    %v178 = vpop.f32.mrf.mxu0
    %v179 = vadd.f32 %v58, %v178
    %v180 = vpop.f32.mrf.mxu0
    %v181 = vpop.f32.mrf.mxu0
    %182 = vdwg.mxu0
    %v183 = vmax.f32 %v136, 0.0
    %v184 = vmax.f32 %v138, 0.0
    %v185 = vmax.f32 %v177, 0.0
    %v186 = vmax.f32 %v179, 0.0
    %v187 = vpack.c.bf16 %v183, %v183
    %v188 = vpack.c.bf16 %v184, %v184
    %v189 = vpack.c.bf16 %v185, %v185
    %v190 = vpack.c.bf16 %v186, %v186
    %v191 = vld [vmem:[#allocation2] sm:$0xff]
    %v192 = vld [vmem:[#allocation2 + $0x8] sm:$0xff]
    %v193 = vld [vmem:[#allocation2 + $0x10] sm:$0xff]
    %v194 = vld [vmem:[#allocation2 + $0x18] sm:$0xff]
    %v195 = vld [vmem:[#allocation2 + $0x20] sm:$0xff]
    %v196 = vld [vmem:[#allocation2 + $0x28] sm:$0xff]
    %v197 = vld [vmem:[#allocation2 + $0x30] sm:$0xff]
    %v198 = vld [vmem:[#allocation2 + $0x38] sm:$0xff]
    %v199 = vld [vmem:[#allocation2 + $0x40] sm:$0xff]
    %v200 = vld [vmem:[#allocation2 + $0x48] sm:$0xff]
    %v201 = vld [vmem:[#allocation2 + $0x50] sm:$0xff]
    %v202 = vld [vmem:[#allocation2 + $0x58] sm:$0xff]
    %v203 = vld [vmem:[#allocation2 + $0x60] sm:$0xff]
    %v204 = vld [vmem:[#allocation2 + $0x68] sm:$0xff]
    %v205 = vld [vmem:[#allocation2 + $0x70] sm:$0xff]
    %v206 = vld [vmem:[#allocation2 + $0x78] sm:$0xff]
    %v207 = vld [vmem:[#allocation2 + $0x80] sm:$0xff]
    %v208 = vld [vmem:[#allocation2 + $0x88] sm:$0xff]
    %v209 = vld [vmem:[#allocation2 + $0x90] sm:$0xff]
    %v210 = vld [vmem:[#allocation2 + $0x98] sm:$0xff]
    %v211 = vld [vmem:[#allocation2 + $0xa0] sm:$0xff]
    %v212 = vld [vmem:[#allocation2 + $0xa8] sm:$0xff]
    %v213 = vld [vmem:[#allocation2 + $0xb0] sm:$0xff]
    %v214 = vld [vmem:[#allocation2 + $0xb8] sm:$0xff]
    %v215 = vld [vmem:[#allocation2 + $0xc0] sm:$0xff]
    %v216 = vld [vmem:[#allocation2 + $0xc8] sm:$0xff]
    %v217 = vld [vmem:[#allocation2 + $0xd0] sm:$0xff]
    %v218 = vld [vmem:[#allocation2 + $0xd8] sm:$0xff]
    %v219 = vld [vmem:[#allocation2 + $0xe0] sm:$0xff]
    %v220 = vld [vmem:[#allocation2 + $0xe8] sm:$0xff]
    %v221 = vld [vmem:[#allocation2 + $0xf0] sm:$0xff]
    %v222 = vld [vmem:[#allocation2 + $0xf8] sm:$0xff]
    %v223 = vld [vmem:[#allocation2 + $0x100] sm:$0xff]
    %v224 = vld [vmem:[#allocation2 + $0x108] sm:$0xff]
    %v225 = vld [vmem:[#allocation2 + $0x110] sm:$0xff]
    %v226 = vld [vmem:[#allocation2 + $0x118] sm:$0xff]
    %v227 = vld [vmem:[#allocation2 + $0x120] sm:$0xff]
    %v228 = vld [vmem:[#allocation2 + $0x128] sm:$0xff]
    %v229 = vld [vmem:[#allocation2 + $0x130] sm:$0xff]
    %v230 = vld [vmem:[#allocation2 + $0x138] sm:$0xff]
    %v231 = vld [vmem:[#allocation2 + $0x140] sm:$0xff]
    %v232 = vld [vmem:[#allocation2 + $0x148] sm:$0xff]
    %v233 = vld [vmem:[#allocation2 + $0x150] sm:$0xff]
    %v234 = vld [vmem:[#allocation2 + $0x158] sm:$0xff]
    %v235 = vld [vmem:[#allocation2 + $0x160] sm:$0xff]
    %v236 = vld [vmem:[#allocation2 + $0x168] sm:$0xff]
    %v237 = vld [vmem:[#allocation2 + $0x170] sm:$0xff]
    %v238 = vld [vmem:[#allocation2 + $0x178] sm:$0xff]
    %v239 = vld [vmem:[#allocation2 + $0x180] sm:$0xff]
    %v240 = vld [vmem:[#allocation2 + $0x188] sm:$0xff]
    %v241 = vld [vmem:[#allocation2 + $0x190] sm:$0xff]
    %v242 = vld [vmem:[#allocation2 + $0x198] sm:$0xff]
    %v243 = vld [vmem:[#allocation2 + $0x1a0] sm:$0xff]
    %v244 = vld [vmem:[#allocation2 + $0x1a8] sm:$0xff]
    %v245 = vld [vmem:[#allocation2 + $0x1b0] sm:$0xff]
    %v246 = vld [vmem:[#allocation2 + $0x1b8] sm:$0xff]
    %v247 = vld [vmem:[#allocation2 + $0x1c0] sm:$0xff]
    %v248 = vld [vmem:[#allocation2 + $0x1c8] sm:$0xff]
    %v249 = vld [vmem:[#allocation2 + $0x1d0] sm:$0xff]
    %v250 = vld [vmem:[#allocation2 + $0x1d8] sm:$0xff]
    %v251 = vld [vmem:[#allocation2 + $0x1e0] sm:$0xff]
    %v252 = vld [vmem:[#allocation2 + $0x1e8] sm:$0xff]
    %v253 = vld [vmem:[#allocation2 + $0x1f0] sm:$0xff]
    %v254 = vld [vmem:[#allocation2 + $0x1f8] sm:$0xff]
    %v255 = vld [vmem:[#allocation2 + $0x200] sm:$0xff]
    %v256 = vld [vmem:[#allocation2 + $0x208] sm:$0xff]
    %v257 = vld [vmem:[#allocation2 + $0x210] sm:$0xff]
    %v258 = vld [vmem:[#allocation2 + $0x218] sm:$0xff]
    %v259 = vld [vmem:[#allocation2 + $0x220] sm:$0xff]
    %v260 = vld [vmem:[#allocation2 + $0x228] sm:$0xff]
    %v261 = vld [vmem:[#allocation2 + $0x230] sm:$0xff]
    %v262 = vld [vmem:[#allocation2 + $0x238] sm:$0xff]
    %v263 = vld [vmem:[#allocation2 + $0x240] sm:$0xff]
    %v264 = vld [vmem:[#allocation2 + $0x248] sm:$0xff]
    %v265 = vld [vmem:[#allocation2 + $0x250] sm:$0xff]
    %v266 = vld [vmem:[#allocation2 + $0x258] sm:$0xff]
    %v267 = vld [vmem:[#allocation2 + $0x260] sm:$0xff]
    %v268 = vld [vmem:[#allocation2 + $0x268] sm:$0xff]
    %v269 = vld [vmem:[#allocation2 + $0x270] sm:$0xff]
    %v270 = vld [vmem:[#allocation2 + $0x278] sm:$0xff]
    %v271 = vld [vmem:[#allocation2 + $0x280] sm:$0xff]
    %v272 = vld [vmem:[#allocation2 + $0x288] sm:$0xff]
    %v273 = vld [vmem:[#allocation2 + $0x290] sm:$0xff]
    %v274 = vld [vmem:[#allocation2 + $0x298] sm:$0xff]
    %v275 = vld [vmem:[#allocation2 + $0x2a0] sm:$0xff]
    %v276 = vld [vmem:[#allocation2 + $0x2a8] sm:$0xff]
    %v277 = vld [vmem:[#allocation2 + $0x2b0] sm:$0xff]
    %v278 = vld [vmem:[#allocation2 + $0x2b8] sm:$0xff]
    %v279 = vld [vmem:[#allocation2 + $0x2c0] sm:$0xff]
    %v280 = vld [vmem:[#allocation2 + $0x2c8] sm:$0xff]
    %v281 = vld [vmem:[#allocation2 + $0x2d0] sm:$0xff]
    %v282 = vld [vmem:[#allocation2 + $0x2d8] sm:$0xff]
    %v283 = vld [vmem:[#allocation2 + $0x2e0] sm:$0xff]
    %v284 = vld [vmem:[#allocation2 + $0x2e8] sm:$0xff]
    %v285 = vld [vmem:[#allocation2 + $0x2f0] sm:$0xff]
    %v286 = vld [vmem:[#allocation2 + $0x2f8] sm:$0xff]
    %v287 = vld [vmem:[#allocation2 + $0x300] sm:$0xff]
    %v288 = vld [vmem:[#allocation2 + $0x308] sm:$0xff]
    %v289 = vld [vmem:[#allocation2 + $0x310] sm:$0xff]
    %v290 = vld [vmem:[#allocation2 + $0x318] sm:$0xff]
    %v291 = vld [vmem:[#allocation2 + $0x320] sm:$0xff]
    %v292 = vld [vmem:[#allocation2 + $0x328] sm:$0xff]
    %v293 = vld [vmem:[#allocation2 + $0x330] sm:$0xff]
    %v294 = vld [vmem:[#allocation2 + $0x338] sm:$0xff]
    %v295 = vld [vmem:[#allocation2 + $0x340] sm:$0xff]
    %v296 = vld [vmem:[#allocation2 + $0x348] sm:$0xff]
    %v297 = vld [vmem:[#allocation2 + $0x350] sm:$0xff]
    %v298 = vld [vmem:[#allocation2 + $0x358] sm:$0xff]
    %v299 = vld [vmem:[#allocation2 + $0x360] sm:$0xff]
    %v300 = vld [vmem:[#allocation2 + $0x368] sm:$0xff]
    %v301 = vld [vmem:[#allocation2 + $0x370] sm:$0xff]
    %v302 = vld [vmem:[#allocation2 + $0x378] sm:$0xff]
    %v303 = vld [vmem:[#allocation2 + $0x380] sm:$0xff]
    %v304 = vld [vmem:[#allocation2 + $0x388] sm:$0xff]
    %v305 = vld [vmem:[#allocation2 + $0x390] sm:$0xff]
    %v306 = vld [vmem:[#allocation2 + $0x398] sm:$0xff]
    %v307 = vld [vmem:[#allocation2 + $0x3a0] sm:$0xff]
    %v308 = vld [vmem:[#allocation2 + $0x3a8] sm:$0xff]
    %v309 = vld [vmem:[#allocation2 + $0x3b0] sm:$0xff]
    %v310 = vld [vmem:[#allocation2 + $0x3b8] sm:$0xff]
    %v311 = vld [vmem:[#allocation2 + $0x3c0] sm:$0xff]
    %v312 = vld [vmem:[#allocation2 + $0x3c8] sm:$0xff]
    %v313 = vld [vmem:[#allocation2 + $0x3d0] sm:$0xff]
    %v314 = vld [vmem:[#allocation2 + $0x3d8] sm:$0xff]
    %v315 = vld [vmem:[#allocation2 + $0x3e0] sm:$0xff]
    %v316 = vld [vmem:[#allocation2 + $0x3e8] sm:$0xff]
    %v317 = vld [vmem:[#allocation2 + $0x3f0] sm:$0xff]
    %v318 = vld [vmem:[#allocation2 + $0x3f8] sm:$0xff]
    %s319 = scalar_lea.vmem %s3, 1
    %v320 = vld [vmem:[%s319] ss:$4 sm:$0xf]
    %v322 = vlaneseq
    %v323 = vshrl.u32 %v322, 7
    %v324 = vsub.s32 0, %v323
    %v325 = vrot.slane %v320, %v324
    %v326 = vlaneseq
    %v327 = vshrl.u32 %v326, 7
    %v328 = vsub.s32 1, %v327
    %v329 = vrot.slane %v320, %v328
    %v330 = vlaneseq
    %v331 = vshrl.u32 %v330, 7
    %v332 = vsub.s32 2, %v331
    %v333 = vrot.slane %v320, %v332
    %v334 = vlaneseq
    %v335 = vshrl.u32 %v334, 7
    %v336 = vsub.s32 3, %v335
    %v337 = vrot.slane %v320, %v336
    %v470 = vunpack.c.l.b16 %v191
    %v471 = vunpack.c.h.b16 %v191
    %v472 = vunpack.c.l.b16 %v192
    %v473 = vunpack.c.h.b16 %v192
    %v474 = vunpack.c.l.b16 %v193
    %v475 = vunpack.c.h.b16 %v193
    %v476 = vunpack.c.l.b16 %v194
    %v477 = vunpack.c.h.b16 %v194
    %v478 = vunpack.c.l.b16 %v195
    %v479 = vunpack.c.h.b16 %v195
    %v480 = vunpack.c.l.b16 %v196
    %v481 = vunpack.c.h.b16 %v196
    %v482 = vunpack.c.l.b16 %v197
    %v483 = vunpack.c.h.b16 %v197
    %v484 = vunpack.c.l.b16 %v198
    %v485 = vunpack.c.h.b16 %v198
    %v486 = vunpack.c.l.b16 %v199
    %v487 = vunpack.c.h.b16 %v199
    %v488 = vunpack.c.l.b16 %v200
    %v489 = vunpack.c.h.b16 %v200
    %v490 = vunpack.c.l.b16 %v201
    %v491 = vunpack.c.h.b16 %v201
    %v492 = vunpack.c.l.b16 %v202
    %v493 = vunpack.c.h.b16 %v202
    %v494 = vunpack.c.l.b16 %v203
    %v495 = vunpack.c.h.b16 %v203
    %v496 = vunpack.c.l.b16 %v204
    %v497 = vunpack.c.h.b16 %v204
    %v498 = vunpack.c.l.b16 %v205
    %v499 = vunpack.c.h.b16 %v205
    %v500 = vunpack.c.l.b16 %v206
    %v501 = vunpack.c.h.b16 %v206
    %v502 = vunpack.c.l.b16 %v207
    %v503 = vunpack.c.h.b16 %v207
    %v504 = vunpack.c.l.b16 %v208
    %v505 = vunpack.c.h.b16 %v208
    %v506 = vunpack.c.l.b16 %v209
    %v507 = vunpack.c.h.b16 %v209
    %v508 = vunpack.c.l.b16 %v210
    %v509 = vunpack.c.h.b16 %v210
    %v510 = vunpack.c.l.b16 %v211
    %v511 = vunpack.c.h.b16 %v211
    %v512 = vunpack.c.l.b16 %v212
    %v513 = vunpack.c.h.b16 %v212
    %v514 = vunpack.c.l.b16 %v213
    %v515 = vunpack.c.h.b16 %v213
    %v516 = vunpack.c.l.b16 %v214
    %v517 = vunpack.c.h.b16 %v214
    %v518 = vunpack.c.l.b16 %v215
    %v519 = vunpack.c.h.b16 %v215
    %v520 = vunpack.c.l.b16 %v216
    %v521 = vunpack.c.h.b16 %v216
    %v522 = vunpack.c.l.b16 %v217
    %v523 = vunpack.c.h.b16 %v217
    %v524 = vunpack.c.l.b16 %v218
    %v525 = vunpack.c.h.b16 %v218
    %v526 = vunpack.c.l.b16 %v219
    %v527 = vunpack.c.h.b16 %v219
    %v528 = vunpack.c.l.b16 %v220
    %v529 = vunpack.c.h.b16 %v220
    %v530 = vunpack.c.l.b16 %v221
    %v531 = vunpack.c.h.b16 %v221
    %v532 = vunpack.c.l.b16 %v222
    %v533 = vunpack.c.h.b16 %v222
    %v534 = vunpack.c.l.b16 %v223
    %v535 = vunpack.c.h.b16 %v223
    %v536 = vunpack.c.l.b16 %v224
    %v537 = vunpack.c.h.b16 %v224
    %v538 = vunpack.c.l.b16 %v225
    %v539 = vunpack.c.h.b16 %v225
    %v540 = vunpack.c.l.b16 %v226
    %v541 = vunpack.c.h.b16 %v226
    %v542 = vunpack.c.l.b16 %v227
    %v543 = vunpack.c.h.b16 %v227
    %v544 = vunpack.c.l.b16 %v228
    %v545 = vunpack.c.h.b16 %v228
    %v546 = vunpack.c.l.b16 %v229
    %v547 = vunpack.c.h.b16 %v229
    %v548 = vunpack.c.l.b16 %v230
    %v549 = vunpack.c.h.b16 %v230
    %v550 = vunpack.c.l.b16 %v231
    %v551 = vunpack.c.h.b16 %v231
    %v552 = vunpack.c.l.b16 %v232
    %v553 = vunpack.c.h.b16 %v232
    %v554 = vunpack.c.l.b16 %v233
    %v555 = vunpack.c.h.b16 %v233
    %v556 = vunpack.c.l.b16 %v234
    %v557 = vunpack.c.h.b16 %v234
    %v558 = vunpack.c.l.b16 %v235
    %v559 = vunpack.c.h.b16 %v235
    %v560 = vunpack.c.l.b16 %v236
    %v561 = vunpack.c.h.b16 %v236
    %v562 = vunpack.c.l.b16 %v237
    %v563 = vunpack.c.h.b16 %v237
    %v564 = vunpack.c.l.b16 %v238
    %v565 = vunpack.c.h.b16 %v238
    %v566 = vunpack.c.l.b16 %v239
    %v567 = vunpack.c.h.b16 %v239
    %v568 = vunpack.c.l.b16 %v240
    %v569 = vunpack.c.h.b16 %v240
    %v570 = vunpack.c.l.b16 %v241
    %v571 = vunpack.c.h.b16 %v241
    %v572 = vunpack.c.l.b16 %v242
    %v573 = vunpack.c.h.b16 %v242
    %v574 = vunpack.c.l.b16 %v243
    %v575 = vunpack.c.h.b16 %v243
    %v576 = vunpack.c.l.b16 %v244
    %v577 = vunpack.c.h.b16 %v244
    %v578 = vunpack.c.l.b16 %v245
    %v579 = vunpack.c.h.b16 %v245
    %v580 = vunpack.c.l.b16 %v246
    %v581 = vunpack.c.h.b16 %v246
    %v582 = vunpack.c.l.b16 %v247
    %v583 = vunpack.c.h.b16 %v247
    %v584 = vunpack.c.l.b16 %v248
    %v585 = vunpack.c.h.b16 %v248
    %v586 = vunpack.c.l.b16 %v249
    %v587 = vunpack.c.h.b16 %v249
    %v588 = vunpack.c.l.b16 %v250
    %v589 = vunpack.c.h.b16 %v250
    %v590 = vunpack.c.l.b16 %v251
    %v591 = vunpack.c.h.b16 %v251
    %v592 = vunpack.c.l.b16 %v252
    %v593 = vunpack.c.h.b16 %v252
    %v594 = vunpack.c.l.b16 %v253
    %v595 = vunpack.c.h.b16 %v253
    %v596 = vunpack.c.l.b16 %v254
    %v597 = vunpack.c.h.b16 %v254
    %v598 = vunpack.c.l.b16 %v255
    %v599 = vunpack.c.h.b16 %v255
    %v600 = vunpack.c.l.b16 %v256
    %v601 = vunpack.c.h.b16 %v256
    %v602 = vunpack.c.l.b16 %v257
    %v603 = vunpack.c.h.b16 %v257
    %v604 = vunpack.c.l.b16 %v258
    %v605 = vunpack.c.h.b16 %v258
    %v606 = vunpack.c.l.b16 %v259
    %v607 = vunpack.c.h.b16 %v259
    %v608 = vunpack.c.l.b16 %v260
    %v609 = vunpack.c.h.b16 %v260
    %v610 = vunpack.c.l.b16 %v261
    %v611 = vunpack.c.h.b16 %v261
    %v612 = vunpack.c.l.b16 %v262
    %v613 = vunpack.c.h.b16 %v262
    %v614 = vunpack.c.l.b16 %v263
    %v615 = vunpack.c.h.b16 %v263
    %v616 = vunpack.c.l.b16 %v264
    %v617 = vunpack.c.h.b16 %v264
    %v618 = vunpack.c.l.b16 %v265
    %v619 = vunpack.c.h.b16 %v265
    %v620 = vunpack.c.l.b16 %v266
    %v621 = vunpack.c.h.b16 %v266
    %v622 = vunpack.c.l.b16 %v267
    %v623 = vunpack.c.h.b16 %v267
    %v624 = vunpack.c.l.b16 %v268
    %v625 = vunpack.c.h.b16 %v268
    %v626 = vunpack.c.l.b16 %v269
    %v627 = vunpack.c.h.b16 %v269
    %v628 = vunpack.c.l.b16 %v270
    %v629 = vunpack.c.h.b16 %v270
    %v630 = vunpack.c.l.b16 %v271
    %v631 = vunpack.c.h.b16 %v271
    %v632 = vunpack.c.l.b16 %v272
    %v633 = vunpack.c.h.b16 %v272
    %v634 = vunpack.c.l.b16 %v273
    %v635 = vunpack.c.h.b16 %v273
    %v636 = vunpack.c.l.b16 %v274
    %v637 = vunpack.c.h.b16 %v274
    %v638 = vunpack.c.l.b16 %v275
    %v639 = vunpack.c.h.b16 %v275
    %v640 = vunpack.c.l.b16 %v276
    %v641 = vunpack.c.h.b16 %v276
    %v642 = vunpack.c.l.b16 %v277
    %v643 = vunpack.c.h.b16 %v277
    %v644 = vunpack.c.l.b16 %v278
    %v645 = vunpack.c.h.b16 %v278
    %v646 = vunpack.c.l.b16 %v279
    %v647 = vunpack.c.h.b16 %v279
    %v648 = vunpack.c.l.b16 %v280
    %v649 = vunpack.c.h.b16 %v280
    %v650 = vunpack.c.l.b16 %v281
    %v651 = vunpack.c.h.b16 %v281
    %v652 = vunpack.c.l.b16 %v282
    %v653 = vunpack.c.h.b16 %v282
    %v654 = vunpack.c.l.b16 %v283
    %v655 = vunpack.c.h.b16 %v283
    %v656 = vunpack.c.l.b16 %v284
    %v657 = vunpack.c.h.b16 %v284
    %v658 = vunpack.c.l.b16 %v285
    %v659 = vunpack.c.h.b16 %v285
    %v660 = vunpack.c.l.b16 %v286
    %v661 = vunpack.c.h.b16 %v286
    %v662 = vunpack.c.l.b16 %v287
    %v663 = vunpack.c.h.b16 %v287
    %v664 = vunpack.c.l.b16 %v288
    %v665 = vunpack.c.h.b16 %v288
    %v666 = vunpack.c.l.b16 %v289
    %v667 = vunpack.c.h.b16 %v289
    %v668 = vunpack.c.l.b16 %v290
    %v669 = vunpack.c.h.b16 %v290
    %v670 = vunpack.c.l.b16 %v291
    %v671 = vunpack.c.h.b16 %v291
    %v672 = vunpack.c.l.b16 %v292
    %v673 = vunpack.c.h.b16 %v292
    %v674 = vunpack.c.l.b16 %v293
    %v675 = vunpack.c.h.b16 %v293
    %v676 = vunpack.c.l.b16 %v294
    %v677 = vunpack.c.h.b16 %v294
    %v678 = vunpack.c.l.b16 %v295
    %v679 = vunpack.c.h.b16 %v295
    %v680 = vunpack.c.l.b16 %v296
    %v681 = vunpack.c.h.b16 %v296
    %v682 = vunpack.c.l.b16 %v297
    %v683 = vunpack.c.h.b16 %v297
    %v684 = vunpack.c.l.b16 %v298
    %v685 = vunpack.c.h.b16 %v298
    %v686 = vunpack.c.l.b16 %v299
    %v687 = vunpack.c.h.b16 %v299
    %v688 = vunpack.c.l.b16 %v300
    %v689 = vunpack.c.h.b16 %v300
    %v690 = vunpack.c.l.b16 %v301
    %v691 = vunpack.c.h.b16 %v301
    %v692 = vunpack.c.l.b16 %v302
    %v693 = vunpack.c.h.b16 %v302
    %v694 = vunpack.c.l.b16 %v303
    %v695 = vunpack.c.h.b16 %v303
    %v696 = vunpack.c.l.b16 %v304
    %v697 = vunpack.c.h.b16 %v304
    %v698 = vunpack.c.l.b16 %v305
    %v699 = vunpack.c.h.b16 %v305
    %v700 = vunpack.c.l.b16 %v306
    %v701 = vunpack.c.h.b16 %v306
    %v702 = vunpack.c.l.b16 %v307
    %v703 = vunpack.c.h.b16 %v307
    %v704 = vunpack.c.l.b16 %v308
    %v705 = vunpack.c.h.b16 %v308
    %v706 = vunpack.c.l.b16 %v309
    %v707 = vunpack.c.h.b16 %v309
    %v708 = vunpack.c.l.b16 %v310
    %v709 = vunpack.c.h.b16 %v310
    %v710 = vunpack.c.l.b16 %v311
    %v711 = vunpack.c.h.b16 %v311
    %v712 = vunpack.c.l.b16 %v312
    %v713 = vunpack.c.h.b16 %v312
    %v714 = vunpack.c.l.b16 %v313
    %v715 = vunpack.c.h.b16 %v313
    %v716 = vunpack.c.l.b16 %v314
    %v717 = vunpack.c.h.b16 %v314
    %v718 = vunpack.c.l.b16 %v315
    %v719 = vunpack.c.h.b16 %v315
    %v720 = vunpack.c.l.b16 %v316
    %v721 = vunpack.c.h.b16 %v316
    %v722 = vunpack.c.l.b16 %v317
    %v723 = vunpack.c.h.b16 %v317
    %v724 = vunpack.c.l.b16 %v318
    %v725 = vunpack.c.h.b16 %v318
    %v726 = vpack.c.b16 %v474, %v470
    %v727 = vpack.c.b16 %v475, %v471
    %v728 = vpack.c.b16 %v476, %v472
    %v729 = vpack.c.b16 %v477, %v473
    %v730 = vpack.c.b16 %v482, %v478
    %v731 = vpack.c.b16 %v483, %v479
    %v732 = vpack.c.b16 %v484, %v480
    %v733 = vpack.c.b16 %v485, %v481
    %v734 = vpack.c.b16 %v490, %v486
    %v735 = vpack.c.b16 %v491, %v487
    %v736 = vpack.c.b16 %v492, %v488
    %v737 = vpack.c.b16 %v493, %v489
    %v738 = vpack.c.b16 %v498, %v494
    %v739 = vpack.c.b16 %v499, %v495
    %v740 = vpack.c.b16 %v500, %v496
    %v741 = vpack.c.b16 %v501, %v497
    %v742 = vpack.c.b16 %v506, %v502
    %v743 = vpack.c.b16 %v507, %v503
    %v744 = vpack.c.b16 %v508, %v504
    %v745 = vpack.c.b16 %v509, %v505
    %v746 = vpack.c.b16 %v514, %v510
    %v747 = vpack.c.b16 %v515, %v511
    %v748 = vpack.c.b16 %v516, %v512
    %v749 = vpack.c.b16 %v517, %v513
    %v750 = vpack.c.b16 %v522, %v518
    %v751 = vpack.c.b16 %v523, %v519
    %v752 = vpack.c.b16 %v524, %v520
    %v753 = vpack.c.b16 %v525, %v521
    %v754 = vpack.c.b16 %v530, %v526
    %v755 = vpack.c.b16 %v531, %v527
    %v756 = vpack.c.b16 %v532, %v528
    %v757 = vpack.c.b16 %v533, %v529
    %v758 = vpack.c.b16 %v538, %v534
    %v759 = vpack.c.b16 %v539, %v535
    %v760 = vpack.c.b16 %v540, %v536
    %v761 = vpack.c.b16 %v541, %v537
    %v762 = vpack.c.b16 %v546, %v542
    %v763 = vpack.c.b16 %v547, %v543
    %v764 = vpack.c.b16 %v548, %v544
    %v765 = vpack.c.b16 %v549, %v545
    %v766 = vpack.c.b16 %v554, %v550
    %v767 = vpack.c.b16 %v555, %v551
    %v768 = vpack.c.b16 %v556, %v552
    %v769 = vpack.c.b16 %v557, %v553
    %v770 = vpack.c.b16 %v562, %v558
    %v771 = vpack.c.b16 %v563, %v559
    %v772 = vpack.c.b16 %v564, %v560
    %v773 = vpack.c.b16 %v565, %v561
    %v774 = vpack.c.b16 %v570, %v566
    %v775 = vpack.c.b16 %v571, %v567
    %v776 = vpack.c.b16 %v572, %v568
    %v777 = vpack.c.b16 %v573, %v569
    %v778 = vpack.c.b16 %v578, %v574
    %v779 = vpack.c.b16 %v579, %v575
    %v780 = vpack.c.b16 %v580, %v576
    %v781 = vpack.c.b16 %v581, %v577
    %v782 = vpack.c.b16 %v586, %v582
    %v783 = vpack.c.b16 %v587, %v583
    %v784 = vpack.c.b16 %v588, %v584
    %v785 = vpack.c.b16 %v589, %v585
    %v786 = vpack.c.b16 %v594, %v590
    %v787 = vpack.c.b16 %v595, %v591
    %v788 = vpack.c.b16 %v596, %v592
    %v789 = vpack.c.b16 %v597, %v593
    %v790 = vpack.c.b16 %v602, %v598
    %v791 = vpack.c.b16 %v603, %v599
    %v792 = vpack.c.b16 %v604, %v600
    %v793 = vpack.c.b16 %v605, %v601
    %v794 = vpack.c.b16 %v610, %v606
    %v795 = vpack.c.b16 %v611, %v607
    %v796 = vpack.c.b16 %v612, %v608
    %v797 = vpack.c.b16 %v613, %v609
    %v798 = vpack.c.b16 %v618, %v614
    %v799 = vpack.c.b16 %v619, %v615
    %v800 = vpack.c.b16 %v620, %v616
    %v801 = vpack.c.b16 %v621, %v617
    %v802 = vpack.c.b16 %v626, %v622
    %v803 = vpack.c.b16 %v627, %v623
    %v804 = vpack.c.b16 %v628, %v624
    %v805 = vpack.c.b16 %v629, %v625
    %v806 = vpack.c.b16 %v634, %v630
    %v807 = vpack.c.b16 %v635, %v631
    %v808 = vpack.c.b16 %v636, %v632
    %v809 = vpack.c.b16 %v637, %v633
    %v810 = vpack.c.b16 %v642, %v638
    %v811 = vpack.c.b16 %v643, %v639
    %v812 = vpack.c.b16 %v644, %v640
    %v813 = vpack.c.b16 %v645, %v641
    %v814 = vpack.c.b16 %v650, %v646
    %v815 = vpack.c.b16 %v651, %v647
    %v816 = vpack.c.b16 %v652, %v648
    %v817 = vpack.c.b16 %v653, %v649
    %v818 = vpack.c.b16 %v658, %v654
    %v819 = vpack.c.b16 %v659, %v655
    %v820 = vpack.c.b16 %v660, %v656
    %v821 = vpack.c.b16 %v661, %v657
    %v822 = vpack.c.b16 %v666, %v662
    %v823 = vpack.c.b16 %v667, %v663
    %v824 = vpack.c.b16 %v668, %v664
    %v825 = vpack.c.b16 %v669, %v665
    %v826 = vpack.c.b16 %v674, %v670
    %v827 = vpack.c.b16 %v675, %v671
    %v828 = vpack.c.b16 %v676, %v672
    %v829 = vpack.c.b16 %v677, %v673
    %v830 = vpack.c.b16 %v682, %v678
    %v831 = vpack.c.b16 %v683, %v679
    %v832 = vpack.c.b16 %v684, %v680
    %v833 = vpack.c.b16 %v685, %v681
    %v834 = vpack.c.b16 %v690, %v686
    %v835 = vpack.c.b16 %v691, %v687
    %v836 = vpack.c.b16 %v692, %v688
    %v837 = vpack.c.b16 %v693, %v689
    %v838 = vpack.c.b16 %v698, %v694
    %v839 = vpack.c.b16 %v699, %v695
    %v840 = vpack.c.b16 %v700, %v696
    %v841 = vpack.c.b16 %v701, %v697
    %v842 = vpack.c.b16 %v706, %v702
    %v843 = vpack.c.b16 %v707, %v703
    %v844 = vpack.c.b16 %v708, %v704
    %v845 = vpack.c.b16 %v709, %v705
    %v846 = vpack.c.b16 %v714, %v710
    %v847 = vpack.c.b16 %v715, %v711
    %v848 = vpack.c.b16 %v716, %v712
    %v849 = vpack.c.b16 %v717, %v713
    %v850 = vpack.c.b16 %v722, %v718
    %v851 = vpack.c.b16 %v723, %v719
    %v852 = vpack.c.b16 %v724, %v720
    %v853 = vpack.c.b16 %v725, %v721
    %982 = vmatprep.subr.bf16.mxu0 %v755
    %983 = vmatpush1.bf16.msra.mxu0 %v754
    %984 = vmatprep.subr.bf16.mxu0 %v751
    %985 = vmatpush1.bf16.msra.mxu0 %v750
    %986 = vmatprep.subr.bf16.mxu0 %v747
    %987 = vmatpush1.bf16.msra.mxu0 %v746
    %988 = vmatprep.subr.bf16.mxu0 %v743
    %989 = vmatpush1.bf16.msra.mxu0 %v742
    %990 = vmatprep.subr.bf16.mxu0 %v739
    %991 = vmatpush1.bf16.msra.mxu0 %v738
    %992 = vmatprep.subr.bf16.mxu0 %v735
    %993 = vmatpush1.bf16.msra.mxu0 %v734
    %994 = vmatprep.subr.bf16.mxu0 %v731
    %995 = vmatpush1.bf16.msra.mxu0 %v730
    %996 = vmatprep.subr.bf16.mxu0 %v727
    %997 = vmatpush1.bf16.msra.mxu0 %v726
    %998 = vmatprep.subr.bf16.mxu0 %v787
    %999 = vmatpush2.bf16.msra.mxu0 %v786
    %1000 = vmatprep.subr.bf16.mxu0 %v783
    %1001 = vmatpush2.bf16.msra.mxu0 %v782
    %1002 = vmatprep.subr.bf16.mxu0 %v779
    %1003 = vmatpush2.bf16.msra.mxu0 %v778
    %1004 = vmatprep.subr.bf16.mxu0 %v775
    %1005 = vmatpush2.bf16.msra.mxu0 %v774
    %1006 = vmatprep.subr.bf16.mxu0 %v771
    %1007 = vmatpush2.bf16.msra.mxu0 %v770
    %1008 = vmatprep.subr.bf16.mxu0 %v767
    %1009 = vmatpush2.bf16.msra.mxu0 %v766
    %1010 = vmatprep.subr.bf16.mxu0 %v763
    %1011 = vmatpush2.bf16.msra.mxu0 %v762
    %1012 = vmatprep.subr.bf16.mxu0 %v759
    %1013 = vmatpush2.bf16.msra.mxu0 %v758
    %1014 = vmatprep.mubr.bf16.mxu0 %v188
    %1015 = vmatmul.mubr.bf16.gmra.mxu0 %v187
    %v1016 = vpop.f32.mrf.mxu0
    %v1017 = vadd.f32 %v325, %v1016
    %v1018 = vpop.f32.mrf.mxu0
    %v1019 = vadd.f32 %v329, %v1018
    %v1020 = vpop.f32.mrf.mxu0
    %v1021 = vpop.f32.mrf.mxu0
    %1022 = vdwg.mxu0
    %1023 = vmatprep.subr.bf16.mxu0 %v819
    %1024 = vmatpush1.bf16.msra.mxu0 %v818
    %1025 = vmatprep.subr.bf16.mxu0 %v815
    %1026 = vmatpush1.bf16.msra.mxu0 %v814
    %1027 = vmatprep.subr.bf16.mxu0 %v811
    %1028 = vmatpush1.bf16.msra.mxu0 %v810
    %1029 = vmatprep.subr.bf16.mxu0 %v807
    %1030 = vmatpush1.bf16.msra.mxu0 %v806
    %1031 = vmatprep.subr.bf16.mxu0 %v803
    %1032 = vmatpush1.bf16.msra.mxu0 %v802
    %1033 = vmatprep.subr.bf16.mxu0 %v799
    %1034 = vmatpush1.bf16.msra.mxu0 %v798
    %1035 = vmatprep.subr.bf16.mxu0 %v795
    %1036 = vmatpush1.bf16.msra.mxu0 %v794
    %1037 = vmatprep.subr.bf16.mxu0 %v791
    %1038 = vmatpush1.bf16.msra.mxu0 %v790
    %1039 = vmatprep.subr.bf16.mxu0 %v851
    %1040 = vmatpush2.bf16.msra.mxu0 %v850
    %1041 = vmatprep.subr.bf16.mxu0 %v847
    %1042 = vmatpush2.bf16.msra.mxu0 %v846
    %1043 = vmatprep.subr.bf16.mxu0 %v843
    %1044 = vmatpush2.bf16.msra.mxu0 %v842
    %1045 = vmatprep.subr.bf16.mxu0 %v839
    %1046 = vmatpush2.bf16.msra.mxu0 %v838
    %1047 = vmatprep.subr.bf16.mxu0 %v835
    %1048 = vmatpush2.bf16.msra.mxu0 %v834
    %1049 = vmatprep.subr.bf16.mxu0 %v831
    %1050 = vmatpush2.bf16.msra.mxu0 %v830
    %1051 = vmatprep.subr.bf16.mxu0 %v827
    %1052 = vmatpush2.bf16.msra.mxu0 %v826
    %1053 = vmatprep.subr.bf16.mxu0 %v823
    %1054 = vmatpush2.bf16.msra.mxu0 %v822
    %1055 = vmatprep.mubr.bf16.mxu0 %v190
    %1056 = vmatmul.mubr.bf16.gmra.mxu0 %v189
    %v1057 = vpop.f32.mrf.mxu0
    %v1058 = vadd.f32 %v1017, %v1057
    %v1059 = vpop.f32.mrf.mxu0
    %v1060 = vadd.f32 %v1019, %v1059
    %v1061 = vpop.f32.mrf.mxu0
    %v1062 = vpop.f32.mrf.mxu0
    %1063 = vdwg.mxu0
    %1064 = vmatprep.subr.bf16.mxu0 %v757
    %1065 = vmatpush1.bf16.msra.mxu0 %v756
    %1066 = vmatprep.subr.bf16.mxu0 %v753
    %1067 = vmatpush1.bf16.msra.mxu0 %v752
    %1068 = vmatprep.subr.bf16.mxu0 %v749
    %1069 = vmatpush1.bf16.msra.mxu0 %v748
    %1070 = vmatprep.subr.bf16.mxu0 %v745
    %1071 = vmatpush1.bf16.msra.mxu0 %v744
    %1072 = vmatprep.subr.bf16.mxu0 %v741
    %1073 = vmatpush1.bf16.msra.mxu0 %v740
    %1074 = vmatprep.subr.bf16.mxu0 %v737
    %1075 = vmatpush1.bf16.msra.mxu0 %v736
    %1076 = vmatprep.subr.bf16.mxu0 %v733
    %1077 = vmatpush1.bf16.msra.mxu0 %v732
    %1078 = vmatprep.subr.bf16.mxu0 %v729
    %1079 = vmatpush1.bf16.msra.mxu0 %v728
    %1080 = vmatprep.subr.bf16.mxu0 %v789
    %1081 = vmatpush2.bf16.msra.mxu0 %v788
    %1082 = vmatprep.subr.bf16.mxu0 %v785
    %1083 = vmatpush2.bf16.msra.mxu0 %v784
    %1084 = vmatprep.subr.bf16.mxu0 %v781
    %1085 = vmatpush2.bf16.msra.mxu0 %v780
    %1086 = vmatprep.subr.bf16.mxu0 %v777
    %1087 = vmatpush2.bf16.msra.mxu0 %v776
    %1088 = vmatprep.subr.bf16.mxu0 %v773
    %1089 = vmatpush2.bf16.msra.mxu0 %v772
    %1090 = vmatprep.subr.bf16.mxu0 %v769
    %1091 = vmatpush2.bf16.msra.mxu0 %v768
    %1092 = vmatprep.subr.bf16.mxu0 %v765
    %1093 = vmatpush2.bf16.msra.mxu0 %v764
    %1094 = vmatprep.subr.bf16.mxu0 %v761
    %1095 = vmatpush2.bf16.msra.mxu0 %v760
    %1096 = vmatprep.mubr.bf16.mxu0 %v188
    %1097 = vmatmul.mubr.bf16.gmra.mxu0 %v187
    %v1098 = vpop.f32.mrf.mxu0
    %v1099 = vadd.f32 %v333, %v1098
    %v1100 = vpop.f32.mrf.mxu0
    %v1101 = vadd.f32 %v337, %v1100
    %v1102 = vpop.f32.mrf.mxu0
    %v1103 = vpop.f32.mrf.mxu0
    %1104 = vdwg.mxu0
    %1105 = vmatprep.subr.bf16.mxu0 %v821
    %1106 = vmatpush1.bf16.msra.mxu0 %v820
    %1107 = vmatprep.subr.bf16.mxu0 %v817
    %1108 = vmatpush1.bf16.msra.mxu0 %v816
    %1109 = vmatprep.subr.bf16.mxu0 %v813
    %1110 = vmatpush1.bf16.msra.mxu0 %v812
    %1111 = vmatprep.subr.bf16.mxu0 %v809
    %1112 = vmatpush1.bf16.msra.mxu0 %v808
    %1113 = vmatprep.subr.bf16.mxu0 %v805
    %1114 = vmatpush1.bf16.msra.mxu0 %v804
    %1115 = vmatprep.subr.bf16.mxu0 %v801
    %1116 = vmatpush1.bf16.msra.mxu0 %v800
    %1117 = vmatprep.subr.bf16.mxu0 %v797
    %1118 = vmatpush1.bf16.msra.mxu0 %v796
    %1119 = vmatprep.subr.bf16.mxu0 %v793
    %1120 = vmatpush1.bf16.msra.mxu0 %v792
    %1121 = vmatprep.subr.bf16.mxu0 %v853
    %1122 = vmatpush2.bf16.msra.mxu0 %v852
    %1123 = vmatprep.subr.bf16.mxu0 %v849
    %1124 = vmatpush2.bf16.msra.mxu0 %v848
    %1125 = vmatprep.subr.bf16.mxu0 %v845
    %1126 = vmatpush2.bf16.msra.mxu0 %v844
    %1127 = vmatprep.subr.bf16.mxu0 %v841
    %1128 = vmatpush2.bf16.msra.mxu0 %v840
    %1129 = vmatprep.subr.bf16.mxu0 %v837
    %1130 = vmatpush2.bf16.msra.mxu0 %v836
    %1131 = vmatprep.subr.bf16.mxu0 %v833
    %1132 = vmatpush2.bf16.msra.mxu0 %v832
    %1133 = vmatprep.subr.bf16.mxu0 %v829
    %1134 = vmatpush2.bf16.msra.mxu0 %v828
    %1135 = vmatprep.subr.bf16.mxu0 %v825
    %1136 = vmatpush2.bf16.msra.mxu0 %v824
    %1137 = vmatprep.mubr.bf16.mxu0 %v190
    %1138 = vmatmul.mubr.bf16.gmra.mxu0 %v189
    %v1139 = vpop.f32.mrf.mxu0
    %v1140 = vadd.f32 %v1099, %v1139
    %v1141 = vpop.f32.mrf.mxu0
    %v1142 = vadd.f32 %v1101, %v1141
    %v1143 = vpop.f32.mrf.mxu0
    %v1144 = vpop.f32.mrf.mxu0
    %1145 = vdwg.mxu0
    %v1146 = vmax.f32 %v1058, 0.0
    %v1147 = vmax.f32 %v1060, 0.0
    %v1148 = vmax.f32 %v1140, 0.0
    %v1149 = vmax.f32 %v1142, 0.0
    %v1150 = vpack.c.bf16 %v1146, %v1146
    %v1151 = vpack.c.bf16 %v1147, %v1147
    %v1152 = vpack.c.bf16 %v1148, %v1148
    %v1153 = vpack.c.bf16 %v1149, %v1149
    %s1154 = scalar_lea.vmem [#allocation2], 1024
    %v1155 = vld [vmem:[%s1154] sm:$0xff]
    %v1156 = vld [vmem:[%s1154 + $0x8] sm:$0xff]
    %v1157 = vld [vmem:[%s1154 + $0x10] sm:$0xff]
    %v1158 = vld [vmem:[%s1154 + $0x18] sm:$0xff]
    %v1159 = vld [vmem:[%s1154 + $0x20] sm:$0xff]
    %v1160 = vld [vmem:[%s1154 + $0x28] sm:$0xff]
    %v1161 = vld [vmem:[%s1154 + $0x30] sm:$0xff]
    %v1162 = vld [vmem:[%s1154 + $0x38] sm:$0xff]
    %v1163 = vld [vmem:[%s1154 + $0x40] sm:$0xff]
    %v1164 = vld [vmem:[%s1154 + $0x48] sm:$0xff]
    %v1165 = vld [vmem:[%s1154 + $0x50] sm:$0xff]
    %v1166 = vld [vmem:[%s1154 + $0x58] sm:$0xff]
    %v1167 = vld [vmem:[%s1154 + $0x60] sm:$0xff]
    %v1168 = vld [vmem:[%s1154 + $0x68] sm:$0xff]
    %v1169 = vld [vmem:[%s1154 + $0x70] sm:$0xff]
    %v1170 = vld [vmem:[%s1154 + $0x78] sm:$0xff]
    %v1171 = vld [vmem:[%s1154 + $0x80] sm:$0xff]
    %v1172 = vld [vmem:[%s1154 + $0x88] sm:$0xff]
    %v1173 = vld [vmem:[%s1154 + $0x90] sm:$0xff]
    %v1174 = vld [vmem:[%s1154 + $0x98] sm:$0xff]
    %v1175 = vld [vmem:[%s1154 + $0xa0] sm:$0xff]
    %v1176 = vld [vmem:[%s1154 + $0xa8] sm:$0xff]
    %v1177 = vld [vmem:[%s1154 + $0xb0] sm:$0xff]
    %v1178 = vld [vmem:[%s1154 + $0xb8] sm:$0xff]
    %v1179 = vld [vmem:[%s1154 + $0xc0] sm:$0xff]
    %v1180 = vld [vmem:[%s1154 + $0xc8] sm:$0xff]
    %v1181 = vld [vmem:[%s1154 + $0xd0] sm:$0xff]
    %v1182 = vld [vmem:[%s1154 + $0xd8] sm:$0xff]
    %v1183 = vld [vmem:[%s1154 + $0xe0] sm:$0xff]
    %v1184 = vld [vmem:[%s1154 + $0xe8] sm:$0xff]
    %v1185 = vld [vmem:[%s1154 + $0xf0] sm:$0xff]
    %v1186 = vld [vmem:[%s1154 + $0xf8] sm:$0xff]
    %v1187 = vld [vmem:[%s1154 + $0x100] sm:$0xff]
    %v1188 = vld [vmem:[%s1154 + $0x108] sm:$0xff]
    %v1189 = vld [vmem:[%s1154 + $0x110] sm:$0xff]
    %v1190 = vld [vmem:[%s1154 + $0x118] sm:$0xff]
    %v1191 = vld [vmem:[%s1154 + $0x120] sm:$0xff]
    %v1192 = vld [vmem:[%s1154 + $0x128] sm:$0xff]
    %v1193 = vld [vmem:[%s1154 + $0x130] sm:$0xff]
    %v1194 = vld [vmem:[%s1154 + $0x138] sm:$0xff]
    %v1195 = vld [vmem:[%s1154 + $0x140] sm:$0xff]
    %v1196 = vld [vmem:[%s1154 + $0x148] sm:$0xff]
    %v1197 = vld [vmem:[%s1154 + $0x150] sm:$0xff]
    %v1198 = vld [vmem:[%s1154 + $0x158] sm:$0xff]
    %v1199 = vld [vmem:[%s1154 + $0x160] sm:$0xff]
    %v1200 = vld [vmem:[%s1154 + $0x168] sm:$0xff]
    %v1201 = vld [vmem:[%s1154 + $0x170] sm:$0xff]
    %v1202 = vld [vmem:[%s1154 + $0x178] sm:$0xff]
    %v1203 = vld [vmem:[%s1154 + $0x180] sm:$0xff]
    %v1204 = vld [vmem:[%s1154 + $0x188] sm:$0xff]
    %v1205 = vld [vmem:[%s1154 + $0x190] sm:$0xff]
    %v1206 = vld [vmem:[%s1154 + $0x198] sm:$0xff]
    %v1207 = vld [vmem:[%s1154 + $0x1a0] sm:$0xff]
    %v1208 = vld [vmem:[%s1154 + $0x1a8] sm:$0xff]
    %v1209 = vld [vmem:[%s1154 + $0x1b0] sm:$0xff]
    %v1210 = vld [vmem:[%s1154 + $0x1b8] sm:$0xff]
    %v1211 = vld [vmem:[%s1154 + $0x1c0] sm:$0xff]
    %v1212 = vld [vmem:[%s1154 + $0x1c8] sm:$0xff]
    %v1213 = vld [vmem:[%s1154 + $0x1d0] sm:$0xff]
    %v1214 = vld [vmem:[%s1154 + $0x1d8] sm:$0xff]
    %v1215 = vld [vmem:[%s1154 + $0x1e0] sm:$0xff]
    %v1216 = vld [vmem:[%s1154 + $0x1e8] sm:$0xff]
    %v1217 = vld [vmem:[%s1154 + $0x1f0] sm:$0xff]
    %v1218 = vld [vmem:[%s1154 + $0x1f8] sm:$0xff]
    %v1219 = vld [vmem:[%s1154 + $0x200] sm:$0xff]
    %v1220 = vld [vmem:[%s1154 + $0x208] sm:$0xff]
    %v1221 = vld [vmem:[%s1154 + $0x210] sm:$0xff]
    %v1222 = vld [vmem:[%s1154 + $0x218] sm:$0xff]
    %v1223 = vld [vmem:[%s1154 + $0x220] sm:$0xff]
    %v1224 = vld [vmem:[%s1154 + $0x228] sm:$0xff]
    %v1225 = vld [vmem:[%s1154 + $0x230] sm:$0xff]
    %v1226 = vld [vmem:[%s1154 + $0x238] sm:$0xff]
    %v1227 = vld [vmem:[%s1154 + $0x240] sm:$0xff]
    %v1228 = vld [vmem:[%s1154 + $0x248] sm:$0xff]
    %v1229 = vld [vmem:[%s1154 + $0x250] sm:$0xff]
    %v1230 = vld [vmem:[%s1154 + $0x258] sm:$0xff]
    %v1231 = vld [vmem:[%s1154 + $0x260] sm:$0xff]
    %v1232 = vld [vmem:[%s1154 + $0x268] sm:$0xff]
    %v1233 = vld [vmem:[%s1154 + $0x270] sm:$0xff]
    %v1234 = vld [vmem:[%s1154 + $0x278] sm:$0xff]
    %v1235 = vld [vmem:[%s1154 + $0x280] sm:$0xff]
    %v1236 = vld [vmem:[%s1154 + $0x288] sm:$0xff]
    %v1237 = vld [vmem:[%s1154 + $0x290] sm:$0xff]
    %v1238 = vld [vmem:[%s1154 + $0x298] sm:$0xff]
    %v1239 = vld [vmem:[%s1154 + $0x2a0] sm:$0xff]
    %v1240 = vld [vmem:[%s1154 + $0x2a8] sm:$0xff]
    %v1241 = vld [vmem:[%s1154 + $0x2b0] sm:$0xff]
    %v1242 = vld [vmem:[%s1154 + $0x2b8] sm:$0xff]
    %v1243 = vld [vmem:[%s1154 + $0x2c0] sm:$0xff]
    %v1244 = vld [vmem:[%s1154 + $0x2c8] sm:$0xff]
    %v1245 = vld [vmem:[%s1154 + $0x2d0] sm:$0xff]
    %v1246 = vld [vmem:[%s1154 + $0x2d8] sm:$0xff]
    %v1247 = vld [vmem:[%s1154 + $0x2e0] sm:$0xff]
    %v1248 = vld [vmem:[%s1154 + $0x2e8] sm:$0xff]
    %v1249 = vld [vmem:[%s1154 + $0x2f0] sm:$0xff]
    %v1250 = vld [vmem:[%s1154 + $0x2f8] sm:$0xff]
    %v1251 = vld [vmem:[%s1154 + $0x300] sm:$0xff]
    %v1252 = vld [vmem:[%s1154 + $0x308] sm:$0xff]
    %v1253 = vld [vmem:[%s1154 + $0x310] sm:$0xff]
    %v1254 = vld [vmem:[%s1154 + $0x318] sm:$0xff]
    %v1255 = vld [vmem:[%s1154 + $0x320] sm:$0xff]
    %v1256 = vld [vmem:[%s1154 + $0x328] sm:$0xff]
    %v1257 = vld [vmem:[%s1154 + $0x330] sm:$0xff]
    %v1258 = vld [vmem:[%s1154 + $0x338] sm:$0xff]
    %v1259 = vld [vmem:[%s1154 + $0x340] sm:$0xff]
    %v1260 = vld [vmem:[%s1154 + $0x348] sm:$0xff]
    %v1261 = vld [vmem:[%s1154 + $0x350] sm:$0xff]
    %v1262 = vld [vmem:[%s1154 + $0x358] sm:$0xff]
    %v1263 = vld [vmem:[%s1154 + $0x360] sm:$0xff]
    %v1264 = vld [vmem:[%s1154 + $0x368] sm:$0xff]
    %v1265 = vld [vmem:[%s1154 + $0x370] sm:$0xff]
    %v1266 = vld [vmem:[%s1154 + $0x378] sm:$0xff]
    %v1267 = vld [vmem:[%s1154 + $0x380] sm:$0xff]
    %v1268 = vld [vmem:[%s1154 + $0x388] sm:$0xff]
    %v1269 = vld [vmem:[%s1154 + $0x390] sm:$0xff]
    %v1270 = vld [vmem:[%s1154 + $0x398] sm:$0xff]
    %v1271 = vld [vmem:[%s1154 + $0x3a0] sm:$0xff]
    %v1272 = vld [vmem:[%s1154 + $0x3a8] sm:$0xff]
    %v1273 = vld [vmem:[%s1154 + $0x3b0] sm:$0xff]
    %v1274 = vld [vmem:[%s1154 + $0x3b8] sm:$0xff]
    %v1275 = vld [vmem:[%s1154 + $0x3c0] sm:$0xff]
    %v1276 = vld [vmem:[%s1154 + $0x3c8] sm:$0xff]
    %v1277 = vld [vmem:[%s1154 + $0x3d0] sm:$0xff]
    %v1278 = vld [vmem:[%s1154 + $0x3d8] sm:$0xff]
    %v1279 = vld [vmem:[%s1154 + $0x3e0] sm:$0xff]
    %v1280 = vld [vmem:[%s1154 + $0x3e8] sm:$0xff]
    %v1281 = vld [vmem:[%s1154 + $0x3f0] sm:$0xff]
    %v1282 = vld [vmem:[%s1154 + $0x3f8] sm:$0xff]
    %s1283 = scalar_lea.vmem %s3, 2
    %v1284 = vld [vmem:[%s1283] ss:$4 sm:$0xf]
    %v1286 = vlaneseq
    %v1287 = vshrl.u32 %v1286, 7
    %v1288 = vsub.s32 0, %v1287
    %v1289 = vrot.slane %v1284, %v1288
    %v1290 = vlaneseq
    %v1291 = vshrl.u32 %v1290, 7
    %v1292 = vsub.s32 1, %v1291
    %v1293 = vrot.slane %v1284, %v1292
    %v1294 = vlaneseq
    %v1295 = vshrl.u32 %v1294, 7
    %v1296 = vsub.s32 2, %v1295
    %v1297 = vrot.slane %v1284, %v1296
    %v1298 = vlaneseq
    %v1299 = vshrl.u32 %v1298, 7
    %v1300 = vsub.s32 3, %v1299
    %v1301 = vrot.slane %v1284, %v1300
    %v1434 = vunpack.c.l.b16 %v1155
    %v1435 = vunpack.c.h.b16 %v1155
    %v1436 = vunpack.c.l.b16 %v1156
    %v1437 = vunpack.c.h.b16 %v1156
    %v1438 = vunpack.c.l.b16 %v1157
    %v1439 = vunpack.c.h.b16 %v1157
    %v1440 = vunpack.c.l.b16 %v1158
    %v1441 = vunpack.c.h.b16 %v1158
    %v1442 = vunpack.c.l.b16 %v1159
    %v1443 = vunpack.c.h.b16 %v1159
    %v1444 = vunpack.c.l.b16 %v1160
    %v1445 = vunpack.c.h.b16 %v1160
    %v1446 = vunpack.c.l.b16 %v1161
    %v1447 = vunpack.c.h.b16 %v1161
    %v1448 = vunpack.c.l.b16 %v1162
    %v1449 = vunpack.c.h.b16 %v1162
    %v1450 = vunpack.c.l.b16 %v1163
    %v1451 = vunpack.c.h.b16 %v1163
    %v1452 = vunpack.c.l.b16 %v1164
    %v1453 = vunpack.c.h.b16 %v1164
    %v1454 = vunpack.c.l.b16 %v1165
    %v1455 = vunpack.c.h.b16 %v1165
    %v1456 = vunpack.c.l.b16 %v1166
    %v1457 = vunpack.c.h.b16 %v1166
    %v1458 = vunpack.c.l.b16 %v1167
    %v1459 = vunpack.c.h.b16 %v1167
    %v1460 = vunpack.c.l.b16 %v1168
    %v1461 = vunpack.c.h.b16 %v1168
    %v1462 = vunpack.c.l.b16 %v1169
    %v1463 = vunpack.c.h.b16 %v1169
    %v1464 = vunpack.c.l.b16 %v1170
    %v1465 = vunpack.c.h.b16 %v1170
    %v1466 = vunpack.c.l.b16 %v1171
    %v1467 = vunpack.c.h.b16 %v1171
    %v1468 = vunpack.c.l.b16 %v1172
    %v1469 = vunpack.c.h.b16 %v1172
    %v1470 = vunpack.c.l.b16 %v1173
    %v1471 = vunpack.c.h.b16 %v1173
    %v1472 = vunpack.c.l.b16 %v1174
    %v1473 = vunpack.c.h.b16 %v1174
    %v1474 = vunpack.c.l.b16 %v1175
    %v1475 = vunpack.c.h.b16 %v1175
    %v1476 = vunpack.c.l.b16 %v1176
    %v1477 = vunpack.c.h.b16 %v1176
    %v1478 = vunpack.c.l.b16 %v1177
    %v1479 = vunpack.c.h.b16 %v1177
    %v1480 = vunpack.c.l.b16 %v1178
    %v1481 = vunpack.c.h.b16 %v1178
    %v1482 = vunpack.c.l.b16 %v1179
    %v1483 = vunpack.c.h.b16 %v1179
    %v1484 = vunpack.c.l.b16 %v1180
    %v1485 = vunpack.c.h.b16 %v1180
    %v1486 = vunpack.c.l.b16 %v1181
    %v1487 = vunpack.c.h.b16 %v1181
    %v1488 = vunpack.c.l.b16 %v1182
    %v1489 = vunpack.c.h.b16 %v1182
    %v1490 = vunpack.c.l.b16 %v1183
    %v1491 = vunpack.c.h.b16 %v1183
    %v1492 = vunpack.c.l.b16 %v1184
    %v1493 = vunpack.c.h.b16 %v1184
    %v1494 = vunpack.c.l.b16 %v1185
    %v1495 = vunpack.c.h.b16 %v1185
    %v1496 = vunpack.c.l.b16 %v1186
    %v1497 = vunpack.c.h.b16 %v1186
    %v1498 = vunpack.c.l.b16 %v1187
    %v1499 = vunpack.c.h.b16 %v1187
    %v1500 = vunpack.c.l.b16 %v1188
    %v1501 = vunpack.c.h.b16 %v1188
    %v1502 = vunpack.c.l.b16 %v1189
    %v1503 = vunpack.c.h.b16 %v1189
    %v1504 = vunpack.c.l.b16 %v1190
    %v1505 = vunpack.c.h.b16 %v1190
    %v1506 = vunpack.c.l.b16 %v1191
    %v1507 = vunpack.c.h.b16 %v1191
    %v1508 = vunpack.c.l.b16 %v1192
    %v1509 = vunpack.c.h.b16 %v1192
    %v1510 = vunpack.c.l.b16 %v1193
    %v1511 = vunpack.c.h.b16 %v1193
    %v1512 = vunpack.c.l.b16 %v1194
    %v1513 = vunpack.c.h.b16 %v1194
    %v1514 = vunpack.c.l.b16 %v1195
    %v1515 = vunpack.c.h.b16 %v1195
    %v1516 = vunpack.c.l.b16 %v1196
    %v1517 = vunpack.c.h.b16 %v1196
    %v1518 = vunpack.c.l.b16 %v1197
    %v1519 = vunpack.c.h.b16 %v1197
    %v1520 = vunpack.c.l.b16 %v1198
    %v1521 = vunpack.c.h.b16 %v1198
    %v1522 = vunpack.c.l.b16 %v1199
    %v1523 = vunpack.c.h.b16 %v1199
    %v1524 = vunpack.c.l.b16 %v1200
    %v1525 = vunpack.c.h.b16 %v1200
    %v1526 = vunpack.c.l.b16 %v1201
    %v1527 = vunpack.c.h.b16 %v1201
    %v1528 = vunpack.c.l.b16 %v1202
    %v1529 = vunpack.c.h.b16 %v1202
    %v1530 = vunpack.c.l.b16 %v1203
    %v1531 = vunpack.c.h.b16 %v1203
    %v1532 = vunpack.c.l.b16 %v1204
    %v1533 = vunpack.c.h.b16 %v1204
    %v1534 = vunpack.c.l.b16 %v1205
    %v1535 = vunpack.c.h.b16 %v1205
    %v1536 = vunpack.c.l.b16 %v1206
    %v1537 = vunpack.c.h.b16 %v1206
    %v1538 = vunpack.c.l.b16 %v1207
    %v1539 = vunpack.c.h.b16 %v1207
    %v1540 = vunpack.c.l.b16 %v1208
    %v1541 = vunpack.c.h.b16 %v1208
    %v1542 = vunpack.c.l.b16 %v1209
    %v1543 = vunpack.c.h.b16 %v1209
    %v1544 = vunpack.c.l.b16 %v1210
    %v1545 = vunpack.c.h.b16 %v1210
    %v1546 = vunpack.c.l.b16 %v1211
    %v1547 = vunpack.c.h.b16 %v1211
    %v1548 = vunpack.c.l.b16 %v1212
    %v1549 = vunpack.c.h.b16 %v1212
    %v1550 = vunpack.c.l.b16 %v1213
    %v1551 = vunpack.c.h.b16 %v1213
    %v1552 = vunpack.c.l.b16 %v1214
    %v1553 = vunpack.c.h.b16 %v1214
    %v1554 = vunpack.c.l.b16 %v1215
    %v1555 = vunpack.c.h.b16 %v1215
    %v1556 = vunpack.c.l.b16 %v1216
    %v1557 = vunpack.c.h.b16 %v1216
    %v1558 = vunpack.c.l.b16 %v1217
    %v1559 = vunpack.c.h.b16 %v1217
    %v1560 = vunpack.c.l.b16 %v1218
    %v1561 = vunpack.c.h.b16 %v1218
    %v1562 = vunpack.c.l.b16 %v1219
    %v1563 = vunpack.c.h.b16 %v1219
    %v1564 = vunpack.c.l.b16 %v1220
    %v1565 = vunpack.c.h.b16 %v1220
    %v1566 = vunpack.c.l.b16 %v1221
    %v1567 = vunpack.c.h.b16 %v1221
    %v1568 = vunpack.c.l.b16 %v1222
    %v1569 = vunpack.c.h.b16 %v1222
    %v1570 = vunpack.c.l.b16 %v1223
    %v1571 = vunpack.c.h.b16 %v1223
    %v1572 = vunpack.c.l.b16 %v1224
    %v1573 = vunpack.c.h.b16 %v1224
    %v1574 = vunpack.c.l.b16 %v1225
    %v1575 = vunpack.c.h.b16 %v1225
    %v1576 = vunpack.c.l.b16 %v1226
    %v1577 = vunpack.c.h.b16 %v1226
    %v1578 = vunpack.c.l.b16 %v1227
    %v1579 = vunpack.c.h.b16 %v1227
    %v1580 = vunpack.c.l.b16 %v1228
    %v1581 = vunpack.c.h.b16 %v1228
    %v1582 = vunpack.c.l.b16 %v1229
    %v1583 = vunpack.c.h.b16 %v1229
    %v1584 = vunpack.c.l.b16 %v1230
    %v1585 = vunpack.c.h.b16 %v1230
    %v1586 = vunpack.c.l.b16 %v1231
    %v1587 = vunpack.c.h.b16 %v1231
    %v1588 = vunpack.c.l.b16 %v1232
    %v1589 = vunpack.c.h.b16 %v1232
    %v1590 = vunpack.c.l.b16 %v1233
    %v1591 = vunpack.c.h.b16 %v1233
    %v1592 = vunpack.c.l.b16 %v1234
    %v1593 = vunpack.c.h.b16 %v1234
    %v1594 = vunpack.c.l.b16 %v1235
    %v1595 = vunpack.c.h.b16 %v1235
    %v1596 = vunpack.c.l.b16 %v1236
    %v1597 = vunpack.c.h.b16 %v1236
    %v1598 = vunpack.c.l.b16 %v1237
    %v1599 = vunpack.c.h.b16 %v1237
    %v1600 = vunpack.c.l.b16 %v1238
    %v1601 = vunpack.c.h.b16 %v1238
    %v1602 = vunpack.c.l.b16 %v1239
    %v1603 = vunpack.c.h.b16 %v1239
    %v1604 = vunpack.c.l.b16 %v1240
    %v1605 = vunpack.c.h.b16 %v1240
    %v1606 = vunpack.c.l.b16 %v1241
    %v1607 = vunpack.c.h.b16 %v1241
    %v1608 = vunpack.c.l.b16 %v1242
    %v1609 = vunpack.c.h.b16 %v1242
    %v1610 = vunpack.c.l.b16 %v1243
    %v1611 = vunpack.c.h.b16 %v1243
    %v1612 = vunpack.c.l.b16 %v1244
    %v1613 = vunpack.c.h.b16 %v1244
    %v1614 = vunpack.c.l.b16 %v1245
    %v1615 = vunpack.c.h.b16 %v1245
    %v1616 = vunpack.c.l.b16 %v1246
    %v1617 = vunpack.c.h.b16 %v1246
    %v1618 = vunpack.c.l.b16 %v1247
    %v1619 = vunpack.c.h.b16 %v1247
    %v1620 = vunpack.c.l.b16 %v1248
    %v1621 = vunpack.c.h.b16 %v1248
    %v1622 = vunpack.c.l.b16 %v1249
    %v1623 = vunpack.c.h.b16 %v1249
    %v1624 = vunpack.c.l.b16 %v1250
    %v1625 = vunpack.c.h.b16 %v1250
    %v1626 = vunpack.c.l.b16 %v1251
    %v1627 = vunpack.c.h.b16 %v1251
    %v1628 = vunpack.c.l.b16 %v1252
    %v1629 = vunpack.c.h.b16 %v1252
    %v1630 = vunpack.c.l.b16 %v1253
    %v1631 = vunpack.c.h.b16 %v1253
    %v1632 = vunpack.c.l.b16 %v1254
    %v1633 = vunpack.c.h.b16 %v1254
    %v1634 = vunpack.c.l.b16 %v1255
    %v1635 = vunpack.c.h.b16 %v1255
    %v1636 = vunpack.c.l.b16 %v1256
    %v1637 = vunpack.c.h.b16 %v1256
    %v1638 = vunpack.c.l.b16 %v1257
    %v1639 = vunpack.c.h.b16 %v1257
    %v1640 = vunpack.c.l.b16 %v1258
    %v1641 = vunpack.c.h.b16 %v1258
    %v1642 = vunpack.c.l.b16 %v1259
    %v1643 = vunpack.c.h.b16 %v1259
    %v1644 = vunpack.c.l.b16 %v1260
    %v1645 = vunpack.c.h.b16 %v1260
    %v1646 = vunpack.c.l.b16 %v1261
    %v1647 = vunpack.c.h.b16 %v1261
    %v1648 = vunpack.c.l.b16 %v1262
    %v1649 = vunpack.c.h.b16 %v1262
    %v1650 = vunpack.c.l.b16 %v1263
    %v1651 = vunpack.c.h.b16 %v1263
    %v1652 = vunpack.c.l.b16 %v1264
    %v1653 = vunpack.c.h.b16 %v1264
    %v1654 = vunpack.c.l.b16 %v1265
    %v1655 = vunpack.c.h.b16 %v1265
    %v1656 = vunpack.c.l.b16 %v1266
    %v1657 = vunpack.c.h.b16 %v1266
    %v1658 = vunpack.c.l.b16 %v1267
    %v1659 = vunpack.c.h.b16 %v1267
    %v1660 = vunpack.c.l.b16 %v1268
    %v1661 = vunpack.c.h.b16 %v1268
    %v1662 = vunpack.c.l.b16 %v1269
    %v1663 = vunpack.c.h.b16 %v1269
    %v1664 = vunpack.c.l.b16 %v1270
    %v1665 = vunpack.c.h.b16 %v1270
    %v1666 = vunpack.c.l.b16 %v1271
    %v1667 = vunpack.c.h.b16 %v1271
    %v1668 = vunpack.c.l.b16 %v1272
    %v1669 = vunpack.c.h.b16 %v1272
    %v1670 = vunpack.c.l.b16 %v1273
    %v1671 = vunpack.c.h.b16 %v1273
    %v1672 = vunpack.c.l.b16 %v1274
    %v1673 = vunpack.c.h.b16 %v1274
    %v1674 = vunpack.c.l.b16 %v1275
    %v1675 = vunpack.c.h.b16 %v1275
    %v1676 = vunpack.c.l.b16 %v1276
    %v1677 = vunpack.c.h.b16 %v1276
    %v1678 = vunpack.c.l.b16 %v1277
    %v1679 = vunpack.c.h.b16 %v1277
    %v1680 = vunpack.c.l.b16 %v1278
    %v1681 = vunpack.c.h.b16 %v1278
    %v1682 = vunpack.c.l.b16 %v1279
    %v1683 = vunpack.c.h.b16 %v1279
    %v1684 = vunpack.c.l.b16 %v1280
    %v1685 = vunpack.c.h.b16 %v1280
    %v1686 = vunpack.c.l.b16 %v1281
    %v1687 = vunpack.c.h.b16 %v1281
    %v1688 = vunpack.c.l.b16 %v1282
    %v1689 = vunpack.c.h.b16 %v1282
    %v1690 = vpack.c.b16 %v1438, %v1434
    %v1691 = vpack.c.b16 %v1439, %v1435
    %v1692 = vpack.c.b16 %v1440, %v1436
    %v1693 = vpack.c.b16 %v1441, %v1437
    %v1694 = vpack.c.b16 %v1446, %v1442
    %v1695 = vpack.c.b16 %v1447, %v1443
    %v1696 = vpack.c.b16 %v1448, %v1444
    %v1697 = vpack.c.b16 %v1449, %v1445
    %v1698 = vpack.c.b16 %v1454, %v1450
    %v1699 = vpack.c.b16 %v1455, %v1451
    %v1700 = vpack.c.b16 %v1456, %v1452
    %v1701 = vpack.c.b16 %v1457, %v1453
    %v1702 = vpack.c.b16 %v1462, %v1458
    %v1703 = vpack.c.b16 %v1463, %v1459
    %v1704 = vpack.c.b16 %v1464, %v1460
    %v1705 = vpack.c.b16 %v1465, %v1461
    %v1706 = vpack.c.b16 %v1470, %v1466
    %v1707 = vpack.c.b16 %v1471, %v1467
    %v1708 = vpack.c.b16 %v1472, %v1468
    %v1709 = vpack.c.b16 %v1473, %v1469
    %v1710 = vpack.c.b16 %v1478, %v1474
    %v1711 = vpack.c.b16 %v1479, %v1475
    %v1712 = vpack.c.b16 %v1480, %v1476
    %v1713 = vpack.c.b16 %v1481, %v1477
    %v1714 = vpack.c.b16 %v1486, %v1482
    %v1715 = vpack.c.b16 %v1487, %v1483
    %v1716 = vpack.c.b16 %v1488, %v1484
    %v1717 = vpack.c.b16 %v1489, %v1485
    %v1718 = vpack.c.b16 %v1494, %v1490
    %v1719 = vpack.c.b16 %v1495, %v1491
    %v1720 = vpack.c.b16 %v1496, %v1492
    %v1721 = vpack.c.b16 %v1497, %v1493
    %v1722 = vpack.c.b16 %v1502, %v1498
    %v1723 = vpack.c.b16 %v1503, %v1499
    %v1724 = vpack.c.b16 %v1504, %v1500
    %v1725 = vpack.c.b16 %v1505, %v1501
    %v1726 = vpack.c.b16 %v1510, %v1506
    %v1727 = vpack.c.b16 %v1511, %v1507
    %v1728 = vpack.c.b16 %v1512, %v1508
    %v1729 = vpack.c.b16 %v1513, %v1509
    %v1730 = vpack.c.b16 %v1518, %v1514
    %v1731 = vpack.c.b16 %v1519, %v1515
    %v1732 = vpack.c.b16 %v1520, %v1516
    %v1733 = vpack.c.b16 %v1521, %v1517
    %v1734 = vpack.c.b16 %v1526, %v1522
    %v1735 = vpack.c.b16 %v1527, %v1523
    %v1736 = vpack.c.b16 %v1528, %v1524
    %v1737 = vpack.c.b16 %v1529, %v1525
    %v1738 = vpack.c.b16 %v1534, %v1530
    %v1739 = vpack.c.b16 %v1535, %v1531
    %v1740 = vpack.c.b16 %v1536, %v1532
    %v1741 = vpack.c.b16 %v1537, %v1533
    %v1742 = vpack.c.b16 %v1542, %v1538
    %v1743 = vpack.c.b16 %v1543, %v1539
    %v1744 = vpack.c.b16 %v1544, %v1540
    %v1745 = vpack.c.b16 %v1545, %v1541
    %v1746 = vpack.c.b16 %v1550, %v1546
    %v1747 = vpack.c.b16 %v1551, %v1547
    %v1748 = vpack.c.b16 %v1552, %v1548
    %v1749 = vpack.c.b16 %v1553, %v1549
    %v1750 = vpack.c.b16 %v1558, %v1554
    %v1751 = vpack.c.b16 %v1559, %v1555
    %v1752 = vpack.c.b16 %v1560, %v1556
    %v1753 = vpack.c.b16 %v1561, %v1557
    %v1754 = vpack.c.b16 %v1566, %v1562
    %v1755 = vpack.c.b16 %v1567, %v1563
    %v1756 = vpack.c.b16 %v1568, %v1564
    %v1757 = vpack.c.b16 %v1569, %v1565
    %v1758 = vpack.c.b16 %v1574, %v1570
    %v1759 = vpack.c.b16 %v1575, %v1571
    %v1760 = vpack.c.b16 %v1576, %v1572
    %v1761 = vpack.c.b16 %v1577, %v1573
    %v1762 = vpack.c.b16 %v1582, %v1578
    %v1763 = vpack.c.b16 %v1583, %v1579
    %v1764 = vpack.c.b16 %v1584, %v1580
    %v1765 = vpack.c.b16 %v1585, %v1581
    %v1766 = vpack.c.b16 %v1590, %v1586
    %v1767 = vpack.c.b16 %v1591, %v1587
    %v1768 = vpack.c.b16 %v1592, %v1588
    %v1769 = vpack.c.b16 %v1593, %v1589
    %v1770 = vpack.c.b16 %v1598, %v1594
    %v1771 = vpack.c.b16 %v1599, %v1595
    %v1772 = vpack.c.b16 %v1600, %v1596
    %v1773 = vpack.c.b16 %v1601, %v1597
    %v1774 = vpack.c.b16 %v1606, %v1602
    %v1775 = vpack.c.b16 %v1607, %v1603
    %v1776 = vpack.c.b16 %v1608, %v1604
    %v1777 = vpack.c.b16 %v1609, %v1605
    %v1778 = vpack.c.b16 %v1614, %v1610
    %v1779 = vpack.c.b16 %v1615, %v1611
    %v1780 = vpack.c.b16 %v1616, %v1612
    %v1781 = vpack.c.b16 %v1617, %v1613
    %v1782 = vpack.c.b16 %v1622, %v1618
    %v1783 = vpack.c.b16 %v1623, %v1619
    %v1784 = vpack.c.b16 %v1624, %v1620
    %v1785 = vpack.c.b16 %v1625, %v1621
    %v1786 = vpack.c.b16 %v1630, %v1626
    %v1787 = vpack.c.b16 %v1631, %v1627
    %v1788 = vpack.c.b16 %v1632, %v1628
    %v1789 = vpack.c.b16 %v1633, %v1629
    %v1790 = vpack.c.b16 %v1638, %v1634
    %v1791 = vpack.c.b16 %v1639, %v1635
    %v1792 = vpack.c.b16 %v1640, %v1636
    %v1793 = vpack.c.b16 %v1641, %v1637
    %v1794 = vpack.c.b16 %v1646, %v1642
    %v1795 = vpack.c.b16 %v1647, %v1643
    %v1796 = vpack.c.b16 %v1648, %v1644
    %v1797 = vpack.c.b16 %v1649, %v1645
    %v1798 = vpack.c.b16 %v1654, %v1650
    %v1799 = vpack.c.b16 %v1655, %v1651
    %v1800 = vpack.c.b16 %v1656, %v1652
    %v1801 = vpack.c.b16 %v1657, %v1653
    %v1802 = vpack.c.b16 %v1662, %v1658
    %v1803 = vpack.c.b16 %v1663, %v1659
    %v1804 = vpack.c.b16 %v1664, %v1660
    %v1805 = vpack.c.b16 %v1665, %v1661
    %v1806 = vpack.c.b16 %v1670, %v1666
    %v1807 = vpack.c.b16 %v1671, %v1667
    %v1808 = vpack.c.b16 %v1672, %v1668
    %v1809 = vpack.c.b16 %v1673, %v1669
    %v1810 = vpack.c.b16 %v1678, %v1674
    %v1811 = vpack.c.b16 %v1679, %v1675
    %v1812 = vpack.c.b16 %v1680, %v1676
    %v1813 = vpack.c.b16 %v1681, %v1677
    %v1814 = vpack.c.b16 %v1686, %v1682
    %v1815 = vpack.c.b16 %v1687, %v1683
    %v1816 = vpack.c.b16 %v1688, %v1684
    %v1817 = vpack.c.b16 %v1689, %v1685
    %1946 = vmatprep.subr.bf16.mxu0 %v1719
    %1947 = vmatpush1.bf16.msra.mxu0 %v1718
    %1948 = vmatprep.subr.bf16.mxu0 %v1715
    %1949 = vmatpush1.bf16.msra.mxu0 %v1714
    %1950 = vmatprep.subr.bf16.mxu0 %v1711
    %1951 = vmatpush1.bf16.msra.mxu0 %v1710
    %1952 = vmatprep.subr.bf16.mxu0 %v1707
    %1953 = vmatpush1.bf16.msra.mxu0 %v1706
    %1954 = vmatprep.subr.bf16.mxu0 %v1703
    %1955 = vmatpush1.bf16.msra.mxu0 %v1702
    %1956 = vmatprep.subr.bf16.mxu0 %v1699
    %1957 = vmatpush1.bf16.msra.mxu0 %v1698
    %1958 = vmatprep.subr.bf16.mxu0 %v1695
    %1959 = vmatpush1.bf16.msra.mxu0 %v1694
    %1960 = vmatprep.subr.bf16.mxu0 %v1691
    %1961 = vmatpush1.bf16.msra.mxu0 %v1690
    %1962 = vmatprep.subr.bf16.mxu0 %v1751
    %1963 = vmatpush2.bf16.msra.mxu0 %v1750
    %1964 = vmatprep.subr.bf16.mxu0 %v1747
    %1965 = vmatpush2.bf16.msra.mxu0 %v1746
    %1966 = vmatprep.subr.bf16.mxu0 %v1743
    %1967 = vmatpush2.bf16.msra.mxu0 %v1742
    %1968 = vmatprep.subr.bf16.mxu0 %v1739
    %1969 = vmatpush2.bf16.msra.mxu0 %v1738
    %1970 = vmatprep.subr.bf16.mxu0 %v1735
    %1971 = vmatpush2.bf16.msra.mxu0 %v1734
    %1972 = vmatprep.subr.bf16.mxu0 %v1731
    %1973 = vmatpush2.bf16.msra.mxu0 %v1730
    %1974 = vmatprep.subr.bf16.mxu0 %v1727
    %1975 = vmatpush2.bf16.msra.mxu0 %v1726
    %1976 = vmatprep.subr.bf16.mxu0 %v1723
    %1977 = vmatpush2.bf16.msra.mxu0 %v1722
    %1978 = vmatprep.mubr.bf16.mxu0 %v1151
    %1979 = vmatmul.mubr.bf16.gmra.mxu0 %v1150
    %v1980 = vpop.f32.mrf.mxu0
    %v1981 = vadd.f32 %v1289, %v1980
    %v1982 = vpop.f32.mrf.mxu0
    %v1983 = vadd.f32 %v1293, %v1982
    %v1984 = vpop.f32.mrf.mxu0
    %v1985 = vpop.f32.mrf.mxu0
    %1986 = vdwg.mxu0
    %1987 = vmatprep.subr.bf16.mxu0 %v1783
    %1988 = vmatpush1.bf16.msra.mxu0 %v1782
    %1989 = vmatprep.subr.bf16.mxu0 %v1779
    %1990 = vmatpush1.bf16.msra.mxu0 %v1778
    %1991 = vmatprep.subr.bf16.mxu0 %v1775
    %1992 = vmatpush1.bf16.msra.mxu0 %v1774
    %1993 = vmatprep.subr.bf16.mxu0 %v1771
    %1994 = vmatpush1.bf16.msra.mxu0 %v1770
    %1995 = vmatprep.subr.bf16.mxu0 %v1767
    %1996 = vmatpush1.bf16.msra.mxu0 %v1766
    %1997 = vmatprep.subr.bf16.mxu0 %v1763
    %1998 = vmatpush1.bf16.msra.mxu0 %v1762
    %1999 = vmatprep.subr.bf16.mxu0 %v1759
    %2000 = vmatpush1.bf16.msra.mxu0 %v1758
    %2001 = vmatprep.subr.bf16.mxu0 %v1755
    %2002 = vmatpush1.bf16.msra.mxu0 %v1754
    %2003 = vmatprep.subr.bf16.mxu0 %v1815
    %2004 = vmatpush2.bf16.msra.mxu0 %v1814
    %2005 = vmatprep.subr.bf16.mxu0 %v1811
    %2006 = vmatpush2.bf16.msra.mxu0 %v1810
    %2007 = vmatprep.subr.bf16.mxu0 %v1807
    %2008 = vmatpush2.bf16.msra.mxu0 %v1806
    %2009 = vmatprep.subr.bf16.mxu0 %v1803
    %2010 = vmatpush2.bf16.msra.mxu0 %v1802
    %2011 = vmatprep.subr.bf16.mxu0 %v1799
    %2012 = vmatpush2.bf16.msra.mxu0 %v1798
    %2013 = vmatprep.subr.bf16.mxu0 %v1795
    %2014 = vmatpush2.bf16.msra.mxu0 %v1794
    %2015 = vmatprep.subr.bf16.mxu0 %v1791
    %2016 = vmatpush2.bf16.msra.mxu0 %v1790
    %2017 = vmatprep.subr.bf16.mxu0 %v1787
    %2018 = vmatpush2.bf16.msra.mxu0 %v1786
    %2019 = vmatprep.mubr.bf16.mxu0 %v1153
    %2020 = vmatmul.mubr.bf16.gmra.mxu0 %v1152
    %v2021 = vpop.f32.mrf.mxu0
    %v2022 = vadd.f32 %v1981, %v2021
    %v2023 = vpop.f32.mrf.mxu0
    %v2024 = vadd.f32 %v1983, %v2023
    %v2025 = vpop.f32.mrf.mxu0
    %v2026 = vpop.f32.mrf.mxu0
    %2027 = vdwg.mxu0
    %2028 = vmatprep.subr.bf16.mxu0 %v1721
    %2029 = vmatpush1.bf16.msra.mxu0 %v1720
    %2030 = vmatprep.subr.bf16.mxu0 %v1717
    %2031 = vmatpush1.bf16.msra.mxu0 %v1716
    %2032 = vmatprep.subr.bf16.mxu0 %v1713
    %2033 = vmatpush1.bf16.msra.mxu0 %v1712
    %2034 = vmatprep.subr.bf16.mxu0 %v1709
    %2035 = vmatpush1.bf16.msra.mxu0 %v1708
    %2036 = vmatprep.subr.bf16.mxu0 %v1705
    %2037 = vmatpush1.bf16.msra.mxu0 %v1704
    %2038 = vmatprep.subr.bf16.mxu0 %v1701
    %2039 = vmatpush1.bf16.msra.mxu0 %v1700
    %2040 = vmatprep.subr.bf16.mxu0 %v1697
    %2041 = vmatpush1.bf16.msra.mxu0 %v1696
    %2042 = vmatprep.subr.bf16.mxu0 %v1693
    %2043 = vmatpush1.bf16.msra.mxu0 %v1692
    %2044 = vmatprep.subr.bf16.mxu0 %v1753
    %2045 = vmatpush2.bf16.msra.mxu0 %v1752
    %2046 = vmatprep.subr.bf16.mxu0 %v1749
    %2047 = vmatpush2.bf16.msra.mxu0 %v1748
    %2048 = vmatprep.subr.bf16.mxu0 %v1745
    %2049 = vmatpush2.bf16.msra.mxu0 %v1744
    %2050 = vmatprep.subr.bf16.mxu0 %v1741
    %2051 = vmatpush2.bf16.msra.mxu0 %v1740
    %2052 = vmatprep.subr.bf16.mxu0 %v1737
    %2053 = vmatpush2.bf16.msra.mxu0 %v1736
    %2054 = vmatprep.subr.bf16.mxu0 %v1733
    %2055 = vmatpush2.bf16.msra.mxu0 %v1732
    %2056 = vmatprep.subr.bf16.mxu0 %v1729
    %2057 = vmatpush2.bf16.msra.mxu0 %v1728
    %2058 = vmatprep.subr.bf16.mxu0 %v1725
    %2059 = vmatpush2.bf16.msra.mxu0 %v1724
    %2060 = vmatprep.mubr.bf16.mxu0 %v1151
    %2061 = vmatmul.mubr.bf16.gmra.mxu0 %v1150
    %v2062 = vpop.f32.mrf.mxu0
    %v2063 = vadd.f32 %v1297, %v2062
    %v2064 = vpop.f32.mrf.mxu0
    %v2065 = vadd.f32 %v1301, %v2064
    %v2066 = vpop.f32.mrf.mxu0
    %v2067 = vpop.f32.mrf.mxu0
    %2068 = vdwg.mxu0
    %2069 = vmatprep.subr.bf16.mxu0 %v1785
    %2070 = vmatpush1.bf16.msra.mxu0 %v1784
    %2071 = vmatprep.subr.bf16.mxu0 %v1781
    %2072 = vmatpush1.bf16.msra.mxu0 %v1780
    %2073 = vmatprep.subr.bf16.mxu0 %v1777
    %2074 = vmatpush1.bf16.msra.mxu0 %v1776
    %2075 = vmatprep.subr.bf16.mxu0 %v1773
    %2076 = vmatpush1.bf16.msra.mxu0 %v1772
    %2077 = vmatprep.subr.bf16.mxu0 %v1769
    %2078 = vmatpush1.bf16.msra.mxu0 %v1768
    %2079 = vmatprep.subr.bf16.mxu0 %v1765
    %2080 = vmatpush1.bf16.msra.mxu0 %v1764
    %2081 = vmatprep.subr.bf16.mxu0 %v1761
    %2082 = vmatpush1.bf16.msra.mxu0 %v1760
    %2083 = vmatprep.subr.bf16.mxu0 %v1757
    %2084 = vmatpush1.bf16.msra.mxu0 %v1756
    %2085 = vmatprep.subr.bf16.mxu0 %v1817
    %2086 = vmatpush2.bf16.msra.mxu0 %v1816
    %2087 = vmatprep.subr.bf16.mxu0 %v1813
    %2088 = vmatpush2.bf16.msra.mxu0 %v1812
    %2089 = vmatprep.subr.bf16.mxu0 %v1809
    %2090 = vmatpush2.bf16.msra.mxu0 %v1808
    %2091 = vmatprep.subr.bf16.mxu0 %v1805
    %2092 = vmatpush2.bf16.msra.mxu0 %v1804
    %2093 = vmatprep.subr.bf16.mxu0 %v1801
    %2094 = vmatpush2.bf16.msra.mxu0 %v1800
    %2095 = vmatprep.subr.bf16.mxu0 %v1797
    %2096 = vmatpush2.bf16.msra.mxu0 %v1796
    %2097 = vmatprep.subr.bf16.mxu0 %v1793
    %2098 = vmatpush2.bf16.msra.mxu0 %v1792
    %2099 = vmatprep.subr.bf16.mxu0 %v1789
    %2100 = vmatpush2.bf16.msra.mxu0 %v1788
    %2101 = vmatprep.mubr.bf16.mxu0 %v1153
    %2102 = vmatmul.mubr.bf16.gmra.mxu0 %v1152
    %v2103 = vpop.f32.mrf.mxu0
    %v2104 = vadd.f32 %v2063, %v2103
    %v2105 = vpop.f32.mrf.mxu0
    %v2106 = vadd.f32 %v2065, %v2105
    %v2107 = vpop.f32.mrf.mxu0
    %v2108 = vpop.f32.mrf.mxu0
    %2109 = vdwg.mxu0
    %v2110 = vmax.f32 %v2022, 0.0
    %v2111 = vmax.f32 %v2024, 0.0
    %v2112 = vmax.f32 %v2104, 0.0
    %v2113 = vmax.f32 %v2106, 0.0
    %v2114 = vpack.c.bf16 %v2110, %v2110
    %v2115 = vpack.c.bf16 %v2111, %v2111
    %v2116 = vpack.c.bf16 %v2112, %v2112
    %v2117 = vpack.c.bf16 %v2113, %v2113
    %v2118 = vld [vmem:[%s4] sm:$0xf]
    %v2119 = vld [vmem:[%s4 + $0x4] sm:$0xf]
    %v2120 = vld [vmem:[%s4 + $0x8] sm:$0xf]
    %v2121 = vld [vmem:[%s4 + $0xc] sm:$0xf]
    %v2122 = vld [vmem:[%s4 + $0x10] sm:$0xf]
    %v2123 = vld [vmem:[%s4 + $0x14] sm:$0xf]
    %v2124 = vld [vmem:[%s4 + $0x18] sm:$0xf]
    %v2125 = vld [vmem:[%s4 + $0x1c] sm:$0xf]
    %v2126 = vld [vmem:[%s4 + $0x20] sm:$0xf]
    %v2127 = vld [vmem:[%s4 + $0x24] sm:$0xf]
    %v2128 = vld [vmem:[%s4 + $0x28] sm:$0xf]
    %v2129 = vld [vmem:[%s4 + $0x2c] sm:$0xf]
    %v2130 = vld [vmem:[%s4 + $0x30] sm:$0xf]
    %v2131 = vld [vmem:[%s4 + $0x34] sm:$0xf]
    %v2132 = vld [vmem:[%s4 + $0x38] sm:$0xf]
    %v2133 = vld [vmem:[%s4 + $0x3c] sm:$0xf]
    %v2134 = vld [vmem:[%s4 + $0x40] sm:$0xf]
    %v2135 = vld [vmem:[%s4 + $0x44] sm:$0xf]
    %v2136 = vld [vmem:[%s4 + $0x48] sm:$0xf]
    %v2137 = vld [vmem:[%s4 + $0x4c] sm:$0xf]
    %v2138 = vld [vmem:[%s4 + $0x50] sm:$0xf]
    %v2139 = vld [vmem:[%s4 + $0x54] sm:$0xf]
    %v2140 = vld [vmem:[%s4 + $0x58] sm:$0xf]
    %v2141 = vld [vmem:[%s4 + $0x5c] sm:$0xf]
    %v2142 = vld [vmem:[%s4 + $0x60] sm:$0xf]
    %v2143 = vld [vmem:[%s4 + $0x64] sm:$0xf]
    %v2144 = vld [vmem:[%s4 + $0x68] sm:$0xf]
    %v2145 = vld [vmem:[%s4 + $0x6c] sm:$0xf]
    %v2146 = vld [vmem:[%s4 + $0x70] sm:$0xf]
    %v2147 = vld [vmem:[%s4 + $0x74] sm:$0xf]
    %v2148 = vld [vmem:[%s4 + $0x78] sm:$0xf]
    %v2149 = vld [vmem:[%s4 + $0x7c] sm:$0xf]
    %v2150 = vld [vmem:[%s4 + $0x80] sm:$0xf]
    %v2151 = vld [vmem:[%s4 + $0x84] sm:$0xf]
    %v2152 = vld [vmem:[%s4 + $0x88] sm:$0xf]
    %v2153 = vld [vmem:[%s4 + $0x8c] sm:$0xf]
    %v2154 = vld [vmem:[%s4 + $0x90] sm:$0xf]
    %v2155 = vld [vmem:[%s4 + $0x94] sm:$0xf]
    %v2156 = vld [vmem:[%s4 + $0x98] sm:$0xf]
    %v2157 = vld [vmem:[%s4 + $0x9c] sm:$0xf]
    %v2158 = vld [vmem:[%s4 + $0xa0] sm:$0xf]
    %v2159 = vld [vmem:[%s4 + $0xa4] sm:$0xf]
    %v2160 = vld [vmem:[%s4 + $0xa8] sm:$0xf]
    %v2161 = vld [vmem:[%s4 + $0xac] sm:$0xf]
    %v2162 = vld [vmem:[%s4 + $0xb0] sm:$0xf]
    %v2163 = vld [vmem:[%s4 + $0xb4] sm:$0xf]
    %v2164 = vld [vmem:[%s4 + $0xb8] sm:$0xf]
    %v2165 = vld [vmem:[%s4 + $0xbc] sm:$0xf]
    %v2166 = vld [vmem:[%s4 + $0xc0] sm:$0xf]
    %v2167 = vld [vmem:[%s4 + $0xc4] sm:$0xf]
    %v2168 = vld [vmem:[%s4 + $0xc8] sm:$0xf]
    %v2169 = vld [vmem:[%s4 + $0xcc] sm:$0xf]
    %v2170 = vld [vmem:[%s4 + $0xd0] sm:$0xf]
    %v2171 = vld [vmem:[%s4 + $0xd4] sm:$0xf]
    %v2172 = vld [vmem:[%s4 + $0xd8] sm:$0xf]
    %v2173 = vld [vmem:[%s4 + $0xdc] sm:$0xf]
    %v2174 = vld [vmem:[%s4 + $0xe0] sm:$0xf]
    %v2175 = vld [vmem:[%s4 + $0xe4] sm:$0xf]
    %v2176 = vld [vmem:[%s4 + $0xe8] sm:$0xf]
    %v2177 = vld [vmem:[%s4 + $0xec] sm:$0xf]
    %v2178 = vld [vmem:[%s4 + $0xf0] sm:$0xf]
    %v2179 = vld [vmem:[%s4 + $0xf4] sm:$0xf]
    %v2180 = vld [vmem:[%s4 + $0xf8] sm:$0xf]
    %v2181 = vld [vmem:[%s4 + $0xfc] sm:$0xf]
    %v2182 = vld [vmem:[%s5] sm:$0x1]
    %v2184 = vlaneseq
    %v2185 = vshrl.u32 %v2184, 7
    %v2186 = vsub.s32 0, %v2185
    %v2187 = vrot.slane %v2182, %v2186
    %v2253 = vunpack.c.l.b16 %v2118
    %v2254 = vunpack.c.l.b16 %v2119
    %v2255 = vunpack.c.l.b16 %v2120
    %v2256 = vunpack.c.l.b16 %v2121
    %v2257 = vunpack.c.l.b16 %v2122
    %v2258 = vunpack.c.l.b16 %v2123
    %v2259 = vunpack.c.l.b16 %v2124
    %v2260 = vunpack.c.l.b16 %v2125
    %v2261 = vunpack.c.l.b16 %v2126
    %v2262 = vunpack.c.l.b16 %v2127
    %v2263 = vunpack.c.l.b16 %v2128
    %v2264 = vunpack.c.l.b16 %v2129
    %v2265 = vunpack.c.l.b16 %v2130
    %v2266 = vunpack.c.l.b16 %v2131
    %v2267 = vunpack.c.l.b16 %v2132
    %v2268 = vunpack.c.l.b16 %v2133
    %v2269 = vunpack.c.l.b16 %v2134
    %v2270 = vunpack.c.l.b16 %v2135
    %v2271 = vunpack.c.l.b16 %v2136
    %v2272 = vunpack.c.l.b16 %v2137
    %v2273 = vunpack.c.l.b16 %v2138
    %v2274 = vunpack.c.l.b16 %v2139
    %v2275 = vunpack.c.l.b16 %v2140
    %v2276 = vunpack.c.l.b16 %v2141
    %v2277 = vunpack.c.l.b16 %v2142
    %v2278 = vunpack.c.l.b16 %v2143
    %v2279 = vunpack.c.l.b16 %v2144
    %v2280 = vunpack.c.l.b16 %v2145
    %v2281 = vunpack.c.l.b16 %v2146
    %v2282 = vunpack.c.l.b16 %v2147
    %v2283 = vunpack.c.l.b16 %v2148
    %v2284 = vunpack.c.l.b16 %v2149
    %v2285 = vunpack.c.l.b16 %v2150
    %v2286 = vunpack.c.l.b16 %v2151
    %v2287 = vunpack.c.l.b16 %v2152
    %v2288 = vunpack.c.l.b16 %v2153
    %v2289 = vunpack.c.l.b16 %v2154
    %v2290 = vunpack.c.l.b16 %v2155
    %v2291 = vunpack.c.l.b16 %v2156
    %v2292 = vunpack.c.l.b16 %v2157
    %v2293 = vunpack.c.l.b16 %v2158
    %v2294 = vunpack.c.l.b16 %v2159
    %v2295 = vunpack.c.l.b16 %v2160
    %v2296 = vunpack.c.l.b16 %v2161
    %v2297 = vunpack.c.l.b16 %v2162
    %v2298 = vunpack.c.l.b16 %v2163
    %v2299 = vunpack.c.l.b16 %v2164
    %v2300 = vunpack.c.l.b16 %v2165
    %v2301 = vunpack.c.l.b16 %v2166
    %v2302 = vunpack.c.l.b16 %v2167
    %v2303 = vunpack.c.l.b16 %v2168
    %v2304 = vunpack.c.l.b16 %v2169
    %v2305 = vunpack.c.l.b16 %v2170
    %v2306 = vunpack.c.l.b16 %v2171
    %v2307 = vunpack.c.l.b16 %v2172
    %v2308 = vunpack.c.l.b16 %v2173
    %v2309 = vunpack.c.l.b16 %v2174
    %v2310 = vunpack.c.l.b16 %v2175
    %v2311 = vunpack.c.l.b16 %v2176
    %v2312 = vunpack.c.l.b16 %v2177
    %v2313 = vunpack.c.l.b16 %v2178
    %v2314 = vunpack.c.l.b16 %v2179
    %v2315 = vunpack.c.l.b16 %v2180
    %v2316 = vunpack.c.l.b16 %v2181
    %v2317 = vpack.c.b16 %v2254, %v2253
    %v2318 = vpack.c.b16 %v2256, %v2255
    %v2319 = vpack.c.b16 %v2258, %v2257
    %v2320 = vpack.c.b16 %v2260, %v2259
    %v2321 = vpack.c.b16 %v2262, %v2261
    %v2322 = vpack.c.b16 %v2264, %v2263
    %v2323 = vpack.c.b16 %v2266, %v2265
    %v2324 = vpack.c.b16 %v2268, %v2267
    %v2325 = vpack.c.b16 %v2270, %v2269
    %v2326 = vpack.c.b16 %v2272, %v2271
    %v2327 = vpack.c.b16 %v2274, %v2273
    %v2328 = vpack.c.b16 %v2276, %v2275
    %v2329 = vpack.c.b16 %v2278, %v2277
    %v2330 = vpack.c.b16 %v2280, %v2279
    %v2331 = vpack.c.b16 %v2282, %v2281
    %v2332 = vpack.c.b16 %v2284, %v2283
    %v2333 = vpack.c.b16 %v2286, %v2285
    %v2334 = vpack.c.b16 %v2288, %v2287
    %v2335 = vpack.c.b16 %v2290, %v2289
    %v2336 = vpack.c.b16 %v2292, %v2291
    %v2337 = vpack.c.b16 %v2294, %v2293
    %v2338 = vpack.c.b16 %v2296, %v2295
    %v2339 = vpack.c.b16 %v2298, %v2297
    %v2340 = vpack.c.b16 %v2300, %v2299
    %v2341 = vpack.c.b16 %v2302, %v2301
    %v2342 = vpack.c.b16 %v2304, %v2303
    %v2343 = vpack.c.b16 %v2306, %v2305
    %v2344 = vpack.c.b16 %v2308, %v2307
    %v2345 = vpack.c.b16 %v2310, %v2309
    %v2346 = vpack.c.b16 %v2312, %v2311
    %v2347 = vpack.c.b16 %v2314, %v2313
    %v2348 = vpack.c.b16 %v2316, %v2315
    %2381 = vmatprep.subr.bf16.mxu0 0
    %2382 = vmatpush1.bf16.msra.mxu0 %v2324
    %2383 = vmatprep.subr.bf16.mxu0 0
    %2384 = vmatpush1.bf16.msra.mxu0 %v2323
    %2385 = vmatprep.subr.bf16.mxu0 0
    %2386 = vmatpush1.bf16.msra.mxu0 %v2322
    %2387 = vmatprep.subr.bf16.mxu0 0
    %2388 = vmatpush1.bf16.msra.mxu0 %v2321
    %2389 = vmatprep.subr.bf16.mxu0 0
    %2390 = vmatpush1.bf16.msra.mxu0 %v2320
    %2391 = vmatprep.subr.bf16.mxu0 0
    %2392 = vmatpush1.bf16.msra.mxu0 %v2319
    %2393 = vmatprep.subr.bf16.mxu0 0
    %2394 = vmatpush1.bf16.msra.mxu0 %v2318
    %2395 = vmatprep.subr.bf16.mxu0 0
    %2396 = vmatpush1.bf16.msra.mxu0 %v2317
    %2397 = vmatprep.subr.bf16.mxu0 0
    %2398 = vmatpush2.bf16.msra.mxu0 %v2332
    %2399 = vmatprep.subr.bf16.mxu0 0
    %2400 = vmatpush2.bf16.msra.mxu0 %v2331
    %2401 = vmatprep.subr.bf16.mxu0 0
    %2402 = vmatpush2.bf16.msra.mxu0 %v2330
    %2403 = vmatprep.subr.bf16.mxu0 0
    %2404 = vmatpush2.bf16.msra.mxu0 %v2329
    %2405 = vmatprep.subr.bf16.mxu0 0
    %2406 = vmatpush2.bf16.msra.mxu0 %v2328
    %2407 = vmatprep.subr.bf16.mxu0 0
    %2408 = vmatpush2.bf16.msra.mxu0 %v2327
    %2409 = vmatprep.subr.bf16.mxu0 0
    %2410 = vmatpush2.bf16.msra.mxu0 %v2326
    %2411 = vmatprep.subr.bf16.mxu0 0
    %2412 = vmatpush2.bf16.msra.mxu0 %v2325
    %2413 = vmatprep.mubr.bf16.mxu0 %v2115
    %2414 = vmatmul.mubr.bf16.gmra.mxu0 %v2114
    %v2415 = vpop.f32.mrf.mxu0
    %v2416 = vadd.f32 %v2187, %v2415
    %v2417 = vpop.f32.mrf.mxu0
    %v2418 = vpop.f32.mrf.mxu0
    %v2419 = vpop.f32.mrf.mxu0
    %2420 = vdwg.mxu0
    %2421 = vmatprep.subr.bf16.mxu0 0
    %2422 = vmatpush1.bf16.msra.mxu0 %v2340
    %2423 = vmatprep.subr.bf16.mxu0 0
    %2424 = vmatpush1.bf16.msra.mxu0 %v2339
    %2425 = vmatprep.subr.bf16.mxu0 0
    %2426 = vmatpush1.bf16.msra.mxu0 %v2338
    %2427 = vmatprep.subr.bf16.mxu0 0
    %2428 = vmatpush1.bf16.msra.mxu0 %v2337
    %2429 = vmatprep.subr.bf16.mxu0 0
    %2430 = vmatpush1.bf16.msra.mxu0 %v2336
    %2431 = vmatprep.subr.bf16.mxu0 0
    %2432 = vmatpush1.bf16.msra.mxu0 %v2335
    %2433 = vmatprep.subr.bf16.mxu0 0
    %2434 = vmatpush1.bf16.msra.mxu0 %v2334
    %2435 = vmatprep.subr.bf16.mxu0 0
    %2436 = vmatpush1.bf16.msra.mxu0 %v2333
    %2437 = vmatprep.subr.bf16.mxu0 0
    %2438 = vmatpush2.bf16.msra.mxu0 %v2348
    %2439 = vmatprep.subr.bf16.mxu0 0
    %2440 = vmatpush2.bf16.msra.mxu0 %v2347
    %2441 = vmatprep.subr.bf16.mxu0 0
    %2442 = vmatpush2.bf16.msra.mxu0 %v2346
    %2443 = vmatprep.subr.bf16.mxu0 0
    %2444 = vmatpush2.bf16.msra.mxu0 %v2345
    %2445 = vmatprep.subr.bf16.mxu0 0
    %2446 = vmatpush2.bf16.msra.mxu0 %v2344
    %2447 = vmatprep.subr.bf16.mxu0 0
    %2448 = vmatpush2.bf16.msra.mxu0 %v2343
    %2449 = vmatprep.subr.bf16.mxu0 0
    %2450 = vmatpush2.bf16.msra.mxu0 %v2342
    %2451 = vmatprep.subr.bf16.mxu0 0
    %2452 = vmatpush2.bf16.msra.mxu0 %v2341
    %2453 = vmatprep.mubr.bf16.mxu0 %v2117
    %2454 = vmatmul.mubr.bf16.gmra.mxu0 %v2116
    %v2455 = vpop.f32.mrf.mxu0
    %v2456 = vadd.f32 %v2416, %v2455
    %v2457 = vpop.f32.mrf.mxu0
    %v2458 = vpop.f32.mrf.mxu0
    %v2459 = vpop.f32.mrf.mxu0
    %2460 = vdwg.mxu0
    %v2461 = vlaneseq
    %v2462 = vand.u32 %v2461, 127
    %vm2463 = vcmp.ge.s32.totalorder %v2462, 2
    %v2464 = vmax.f32 %v2456, -20.0
    %v2465 = vmin.f32 %v2464, 2.0
    %v2466 = vsel %vm2463, %v2465, %v2456
    %vm2467 = vcmask 31744
    %2468 = vst.msk [vmem:[%s6] sm:$0xff] %vm2467, %v2466
    // Predicated region
    $region30: #{policy_net_forward.1} parent=1 // pred_check
      _
    $region31: #{policy_net_forward.1} parent=1 // pred_check_branch
      %2470 = sbr.rel (0) target = $region33
    $region32: #{policy_net_forward.1} parent=1 // pred_region
      _
    $region33: #{policy_net_forward.1} parent=1 // pred_fallthru
      _
    // Predicated region
    $region34: #{policy_net_forward.1} parent=1 // pred_check
      _
    $region35: #{policy_net_forward.1} parent=1 // pred_check_branch
      %2472 = sbr.rel (0) target = $region37
    $region36: #{policy_net_forward.1} parent=1 // pred_region
      _
    $region37: #{policy_net_forward.1} parent=1 // pred_fallthru
      _
    %2473 = vsyncpa [#allocation3], 1

</llo_original>
